<compile_context>
chip_gen: v7x
topology: tpu7x:2x2x1
jax: 0.10.0
libtpu: 0.0.40
codegen_flags: <defaults>
</compile_context>

<pallas_src>
import jax
import jax.numpy as jnp
from jax.experimental import pallas as pl
from jax.experimental.pallas import tpu as pltpu


def _round_up(x, m):
    return (x + m - 1) // m * m


# ----------------------------------------------------------------------------
# Pallas kernel: whole bottleneck block for one image of the batch.
# All channel dims are already padded to multiples of 128 by the wrapper.
# ----------------------------------------------------------------------------
def _bottleneck_kernel(
    x_ref,    # (1, H, W, Cin)   f32
    w1_ref,   # (Cin, Cw)        bf16  (BN scale folded in)
    b1_ref,   # (1, Cw)          f32
    w2_ref,   # (9*Cw, Cw)       bf16  (3x3 HWIO reshaped for im2col, BN folded in)
    b2_ref,   # (1, Cw)          f32
    w3_ref,   # (Cw, Cout)       bf16  (BN scale folded in)
    b3_ref,   # (1, Cout)        f32
    o_ref,    # (1, H, W, Cout)  f32
):
    H, W = x_ref.shape[1], x_ref.shape[2]
    Cin = x_ref.shape[3]
    Cw = w1_ref.shape[1]
    Cout = w3_ref.shape[1]
    HW = H * W

    x_f32 = x_ref[...].reshape(HW, Cin)          # keep f32 copy for the residual
    x_bf = x_f32.astype(jnp.bfloat16)

    # ---- conv1: 1x1 conv (+folded BN) + bias + ReLU -- one MXU dot, K = Cin ----
    y1 = jnp.dot(x_bf, w1_ref[...], preferred_element_type=jnp.float32)
    y1 = jnp.maximum(y1 + b1_ref[...], 0.0)                 # (HW, Cw) f32

    # ---- conv2: 3x3, stride 1, pad 1 -- im2col into one K = 9*Cw MXU dot ----
    # H shifts: zero-pad along H (leading, untiled dim -> free slices).
    y1hw = y1.reshape(H, W, Cw)
    zrow = jnp.zeros((1, W, Cw), jnp.float32)
    ypad = jnp.concatenate([zrow, y1hw, zrow], axis=0)      # (H+2, W, Cw)

    # W shifts: sublane roll of the flattened (HW, Cw) slab + boundary masks
    # (wrapped rows land exactly on the masked w==0 / w==W-1 positions).
    wpos = jax.lax.broadcasted_iota(jnp.int32, (HW, Cw), 0) % W
    first_col = wpos == 0
    last_col = wpos == W - 1

    taps = []
    for kh in range(3):
        slab = ypad[kh:kh + H].reshape(HW, Cw)              # free leading-dim slice
        left = jnp.where(first_col, 0.0, pltpu.roll(slab, shift=1, axis=0))
        right = jnp.where(last_col, 0.0, pltpu.roll(slab, shift=HW - 1, axis=0))
        taps += [left.astype(jnp.bfloat16),
                 slab.astype(jnp.bfloat16),
                 right.astype(jnp.bfloat16)]
    patches = jnp.concatenate(taps, axis=-1)                # (HW, 9*Cw), lane-aligned

    y2 = jnp.dot(patches, w2_ref[...], preferred_element_type=jnp.float32)
    y2 = jnp.maximum(y2 + b2_ref[...], 0.0)                 # (HW, Cw) f32

    # ---- conv3: 1x1 conv (+folded BN) + bias, then residual add + ReLU ----
    y3 = jnp.dot(y2.astype(jnp.bfloat16), w3_ref[...],
                 preferred_element_type=jnp.float32)
    out = jnp.maximum(y3 + b3_ref[...] + x_f32, 0.0)        # identity residual path
    o_ref[...] = out.reshape(1, H, W, Cout).astype(o_ref.dtype)


# ----------------------------------------------------------------------------
# Wrapper: fold BN scale into weights, pad channels to lane width, call kernel.
# ----------------------------------------------------------------------------
def bottleneck_forward(x, params):
    """x: (N, H, W, Cin) NHWC float32.  Returns (N, H, W, Cout)."""
    N, H, W, Cin = x.shape
    width = params["w1"].shape[1]
    Cout = params["w3"].shape[1]
    assert Cin == Cout, "identity residual path requires inplanes == planes*4"

    LANE = 128
    Cin_p = _round_up(Cin, LANE)
    Cw_p = _round_up(width, LANE)
    Cout_p = _round_up(Cout, LANE)
    assert Cin_p == Cout_p

    f32, bf16 = jnp.float32, jnp.bfloat16

    # Fold BN scale into the conv weights (host side), pad, cast to bf16.
    w1 = (params["w1"] * params["s1"]).astype(f32)                        # (Cin, width)
    w2 = (params["w2"] * params["s2"].reshape(1, 1, 1, width)).astype(f32)  # (3,3,w,w)
    w3 = (params["w3"] * params["s3"]).astype(f32)                        # (width, Cout)

    w1p = jnp.zeros((Cin_p, Cw_p), f32).at[:Cin, :width].set(w1).astype(bf16)
    w2p = jnp.zeros((3, 3, Cw_p, Cw_p), f32).at[:, :, :width, :width].set(w2)
    w2r = w2p.reshape(9 * Cw_p, Cw_p).astype(bf16)          # im2col weight layout
    w3p = jnp.zeros((Cw_p, Cout_p), f32).at[:width, :Cout].set(w3).astype(bf16)

    b1p = jnp.zeros((1, Cw_p), f32).at[:, :width].set(params["b1"])
    b2p = jnp.zeros((1, Cw_p), f32).at[:, :width].set(params["b2"])
    b3p = jnp.zeros((1, Cout_p), f32).at[:, :Cout].set(params["b3"])

    xp = jnp.zeros((N, H, W, Cin_p), x.dtype).at[..., :Cin].set(x)

    full = lambda shape: pl.BlockSpec(shape, lambda n: (0,) * len(shape))

    out = pl.pallas_call(
        _bottleneck_kernel,
        out_shape=jax.ShapeDtypeStruct((N, H, W, Cout_p), x.dtype),
        grid=(N,),
        in_specs=[
            pl.BlockSpec((1, H, W, Cin_p), lambda n: (n, 0, 0, 0)),   # x
            full((Cin_p, Cw_p)),                                      # w1 (scale folded)
            full((1, Cw_p)),                                          # b1
            full((9 * Cw_p, Cw_p)),                                   # w2 (im2col layout)
            full((1, Cw_p)),                                          # b2
            full((Cw_p, Cout_p)),                                     # w3 (scale folded)
            full((1, Cout_p)),                                        # b3
        ],
        out_specs=pl.BlockSpec((1, H, W, Cout_p), lambda n: (n, 0, 0, 0)),
        compiler_params=pltpu.CompilerParams(
            dimension_semantics=("parallel",),
            vmem_limit_bytes=64 * 1024 * 1024),
    )(xp, w1p, b1p, w2r, b2p, w3p, b3p)

    return out[..., :Cout]


# ----------------------------------------------------------------------------
# Pure-JAX reference (f32 throughout) for correctness check
# ----------------------------------------------------------------------------
def _conv_bn(x, w_hwio, s, b, relu, pad):
    y = jax.lax.conv_general_dilated(
        x, w_hwio, window_strides=(1, 1),
        padding=[(pad, pad), (pad, pad)],
        dimension_numbers=("NHWC", "HWIO", "NHWC"))
    y = y * s.reshape(1, 1, 1, -1) + b.reshape(1, 1, 1, -1)
    return jnp.maximum(y, 0.0) if relu else y


def bottleneck_reference(x, p):
    out = _conv_bn(x, p["w1"][None, None], p["s1"][0], p["b1"][0], True, 0)
    out = _conv_bn(out, p["w2"], p["s2"][0], p["b2"][0], True, 1)
    out = _conv_bn(out, p["w3"][None, None], p["s3"][0], p["b3"][0], False, 0)
    return jnp.maximum(out + x, 0.0)


# ----------------------------------------------------------------------------
# Deterministic parameter construction (folded conv+BN, eval mode)
# ----------------------------------------------------------------------------
def make_params(key, inplanes, planes, base_width=64, groups=1):
    expansion = 4
    width = int(planes * (base_width / 64.0)) * groups
    out_ch = planes * expansion
    eps = 1e-5

    def bn(key, c):
        k1, k2, k3, k4 = jax.random.split(key, 4)
        gamma = 1.0 + 0.1 * jax.random.normal(k1, (c,), jnp.float32)
        beta = 0.05 * jax.random.normal(k2, (c,), jnp.float32)
        rmean = 0.1 * jax.random.normal(k3, (c,), jnp.float32)
        rvar = 1.0 + 0.1 * jnp.abs(jax.random.normal(k4, (c,), jnp.float32))
        scale = gamma / jnp.sqrt(rvar + eps)
        bias = beta - rmean * scale
        return scale.reshape(1, c), bias.reshape(1, c)

    ks = jax.random.split(key, 6)
    w1 = 0.05 * jax.random.normal(ks[0], (inplanes, width), jnp.float32)
    w2 = 0.05 * jax.random.normal(ks[1], (3, 3, width, width), jnp.float32)
    w3 = 0.05 * jax.random.normal(ks[2], (width, out_ch), jnp.float32)
    s1, b1 = bn(ks[3], width)
    s2, b2 = bn(ks[4], width)
    s3, b3 = bn(ks[5], out_ch)
    return dict(w1=w1, s1=s1, b1=b1, w2=w2, s2=s2, b2=b2, w3=w3, s3=s3, b3=b3)


if __name__ == "__main__":
    # Small shapes: batch=2, inplanes=32 (= planes*4), planes=8 -> width=8,
    # spatial 8x8, stride=1, downsample=None (identity residual).
    N, H, W = 2, 8, 8
    planes = 8
    inplanes = planes * 4  # 32

    key = jax.random.PRNGKey(0)
    kx, kp = jax.random.split(key)
    x = jax.random.normal(kx, (N, H, W, inplanes), jnp.float32)
    params = make_params(kp, inplanes, planes)

    out = jax.block_until_ready(bottleneck_forward(x, params))
    ref = bottleneck_reference(x, params)

    assert out.shape == (N, H, W, inplanes)
    err = float(jnp.max(jnp.abs(out - ref)))
    # bf16 MXU operands (f32 accumulate) vs. pure-f32 reference -> looser tolerance.
    assert jnp.allclose(out, ref, atol=2e-2, rtol=2e-2), err

    print("KERNEL_OK")
</pallas_src>

<mosaic_0001>
module attributes {stable_mosaic.version = 11 : i64} {
  func.func @_bottleneck_kernel(%arg0: i32, %arg1: memref<1x8x8x128xf32, #tpu.memory_space<vmem>>, %arg2: memref<128x128xbf16, #tpu.memory_space<vmem>>, %arg3: memref<1x128xf32, #tpu.memory_space<vmem>>, %arg4: memref<1152x128xbf16, #tpu.memory_space<vmem>>, %arg5: memref<1x128xf32, #tpu.memory_space<vmem>>, %arg6: memref<128x128xbf16, #tpu.memory_space<vmem>>, %arg7: memref<1x128xf32, #tpu.memory_space<vmem>>, %arg8: memref<1x8x8x128xf32, #tpu.memory_space<vmem>>) attributes {dimension_semantics = [#tpu.dimension_semantics<parallel>], iteration_bounds = array<i64: 2>, scalar_prefetch = 0 : i64, scratch_operands = 0 : i64, tpu.core_type = #tpu.core_type<tc>, window_params = [{transform_indices = @transform_0, window_bounds = array<i64: 1, 8, 8, 128>}, {pipeline_mode = #tpu.pipeline_mode<synchronous>, transform_indices = @transform_1, window_bounds = array<i64: 128, 128>}, {pipeline_mode = #tpu.pipeline_mode<synchronous>, transform_indices = @transform_2, window_bounds = array<i64: 1, 128>}, {pipeline_mode = #tpu.pipeline_mode<synchronous>, transform_indices = @transform_3, window_bounds = array<i64: 1152, 128>}, {pipeline_mode = #tpu.pipeline_mode<synchronous>, transform_indices = @transform_4, window_bounds = array<i64: 1, 128>}, {pipeline_mode = #tpu.pipeline_mode<synchronous>, transform_indices = @transform_5, window_bounds = array<i64: 128, 128>}, {pipeline_mode = #tpu.pipeline_mode<synchronous>, transform_indices = @transform_6, window_bounds = array<i64: 1, 128>}, {transform_indices = @transform_7, window_bounds = array<i64: 1, 8, 8, 128>}]} {
    %c0 = arith.constant 0 : index
    %c0_0 = arith.constant 0 : index
    %c0_1 = arith.constant 0 : index
    %c0_2 = arith.constant 0 : index
    %0 = vector.load %arg1[%c0, %c0_0, %c0_1, %c0_2] : memref<1x8x8x128xf32, #tpu.memory_space<vmem>>, vector<1x8x8x128xf32>
    %1 = vector.shape_cast %0 : vector<1x8x8x128xf32> to vector<64x128xf32>
    %2 = arith.truncf %1 : vector<64x128xf32> to vector<64x128xbf16>
    %c0_3 = arith.constant 0 : index
    %c0_4 = arith.constant 0 : index
    %3 = vector.load %arg2[%c0_3, %c0_4] : memref<128x128xbf16, #tpu.memory_space<vmem>>, vector<128x128xbf16>
    %cst = arith.constant dense<0.000000e+00> : vector<64x128xf32>
    %4 = tpu.matmul %2, %3, %cst {dimension_numbers = #tpu.dot_dimension_numbers<[1], [0], [0], [1], [0, 0, 1, 1], [], []>} : vector<64x128xbf16>, vector<128x128xbf16>, vector<64x128xf32> -> vector<64x128xf32>
    %c0_5 = arith.constant 0 : index
    %c0_6 = arith.constant 0 : index
    %5 = vector.load %arg3[%c0_5, %c0_6] : memref<1x128xf32, #tpu.memory_space<vmem>>, vector<1x128xf32>
    %6 = vector.broadcast %5 : vector<1x128xf32> to vector<64x128xf32>
    %7 = arith.addf %4, %6 : vector<64x128xf32>
    %cst_7 = arith.constant 0.000000e+00 : f32
    %8 = vector.broadcast %cst_7 : f32 to vector<64x128xf32>
    %9 = arith.maximumf %7, %8 : vector<64x128xf32>
    %10 = vector.shape_cast %9 : vector<64x128xf32> to vector<8x8x128xf32>
    %cst_8 = arith.constant 0.000000e+00 : f32
    %11 = vector.broadcast %cst_8 : f32 to vector<1x8x128xf32>
    %12 = tpu.concatenate %11, %10, %11 in 0 : vector<1x8x128xf32>, vector<8x8x128xf32>, vector<1x8x128xf32> -> vector<10x8x128xf32>
    %13 = tpu.iota {dimensions = array<i32: 0>} : vector<64x128xi32>
    %c8_i32 = arith.constant 8 : i32
    %c0_i32 = arith.constant 0 : i32
    %14 = arith.cmpi eq, %c8_i32, %c0_i32 : i32
    %c1_i32 = arith.constant 1 : i32
    %15 = arith.select %14, %c1_i32, %c8_i32 : i32
    %16 = vector.broadcast %15 : i32 to vector<64x128xi32>
    %17 = arith.remsi %13, %16 : vector<64x128xi32>
    %c0_i32_9 = arith.constant 0 : i32
    %18 = vector.broadcast %c0_i32_9 : i32 to vector<64x128xi32>
    %19 = arith.cmpi ne, %17, %18 : vector<64x128xi32>
    %c0_i32_10 = arith.constant 0 : i32
    %20 = vector.broadcast %c0_i32_10 : i32 to vector<64x128xi32>
    %21 = arith.cmpi slt, %17, %20 : vector<64x128xi32>
    %c0_i32_11 = arith.constant 0 : i32
    %22 = arith.cmpi slt, %15, %c0_i32_11 : i32
    %23 = vector.broadcast %22 : i1 to vector<64x128xi1>
    %24 = vector.broadcast %23 : vector<64x128xi1> to vector<64x128xi1>
    %25 = arith.xori %21, %24 : vector<64x128xi1>
    %26 = arith.andi %25, %19 : vector<64x128xi1>
    %27 = vector.broadcast %15 : i32 to vector<64x128xi32>
    %28 = arith.addi %17, %27 : vector<64x128xi32>
    %29 = arith.select %26, %28, %17 : vector<64x128xi1>, vector<64x128xi32>
    %c0_i32_12 = arith.constant 0 : i32
    %30 = vector.broadcast %c0_i32_12 : i32 to vector<64x128xi32>
    %31 = arith.cmpi eq, %29, %30 : vector<64x128xi32>
    %c7_i32 = arith.constant 7 : i32
    %32 = vector.broadcast %c7_i32 : i32 to vector<64x128xi32>
    %33 = arith.cmpi eq, %29, %32 : vector<64x128xi32>
    %34 = vector.extract_strided_slice %12 {offsets = [0, 0, 0], sizes = [8, 8, 128], strides = [1, 1, 1]} : vector<10x8x128xf32> to vector<8x8x128xf32>
    %35 = vector.shape_cast %34 : vector<8x8x128xf32> to vector<64x128xf32>
    %c1_i32_13 = arith.constant 1 : i32
    %36 = tpu.dynamic_rotate %35 by %c1_i32_13 dim 0 : vector<64x128xf32>, i32 -> vector<64x128xf32>
    %cst_14 = arith.constant 0.000000e+00 : f32
    %37 = vector.broadcast %cst_14 : f32 to vector<64x128xf32>
    %38 = arith.select %31, %37, %36 : vector<64x128xi1>, vector<64x128xf32>
    %c63_i32 = arith.constant 63 : i32
    %39 = tpu.dynamic_rotate %35 by %c63_i32 dim 0 : vector<64x128xf32>, i32 -> vector<64x128xf32>
    %cst_15 = arith.constant 0.000000e+00 : f32
    %40 = vector.broadcast %cst_15 : f32 to vector<64x128xf32>
    %41 = arith.select %33, %40, %39 : vector<64x128xi1>, vector<64x128xf32>
    %42 = arith.truncf %38 : vector<64x128xf32> to vector<64x128xbf16>
    %43 = arith.truncf %35 : vector<64x128xf32> to vector<64x128xbf16>
    %44 = arith.truncf %41 : vector<64x128xf32> to vector<64x128xbf16>
    %45 = vector.extract_strided_slice %12 {offsets = [1, 0, 0], sizes = [8, 8, 128], strides = [1, 1, 1]} : vector<10x8x128xf32> to vector<8x8x128xf32>
    %46 = vector.shape_cast %45 : vector<8x8x128xf32> to vector<64x128xf32>
    %c1_i32_16 = arith.constant 1 : i32
    %47 = tpu.dynamic_rotate %46 by %c1_i32_16 dim 0 : vector<64x128xf32>, i32 -> vector<64x128xf32>
    %cst_17 = arith.constant 0.000000e+00 : f32
    %48 = vector.broadcast %cst_17 : f32 to vector<64x128xf32>
    %49 = arith.select %31, %48, %47 : vector<64x128xi1>, vector<64x128xf32>
    %c63_i32_18 = arith.constant 63 : i32
    %50 = tpu.dynamic_rotate %46 by %c63_i32_18 dim 0 : vector<64x128xf32>, i32 -> vector<64x128xf32>
    %cst_19 = arith.constant 0.000000e+00 : f32
    %51 = vector.broadcast %cst_19 : f32 to vector<64x128xf32>
    %52 = arith.select %33, %51, %50 : vector<64x128xi1>, vector<64x128xf32>
    %53 = arith.truncf %49 : vector<64x128xf32> to vector<64x128xbf16>
    %54 = arith.truncf %46 : vector<64x128xf32> to vector<64x128xbf16>
    %55 = arith.truncf %52 : vector<64x128xf32> to vector<64x128xbf16>
    %56 = vector.extract_strided_slice %12 {offsets = [2, 0, 0], sizes = [8, 8, 128], strides = [1, 1, 1]} : vector<10x8x128xf32> to vector<8x8x128xf32>
    %57 = vector.shape_cast %56 : vector<8x8x128xf32> to vector<64x128xf32>
    %c1_i32_20 = arith.constant 1 : i32
    %58 = tpu.dynamic_rotate %57 by %c1_i32_20 dim 0 : vector<64x128xf32>, i32 -> vector<64x128xf32>
    %cst_21 = arith.constant 0.000000e+00 : f32
    %59 = vector.broadcast %cst_21 : f32 to vector<64x128xf32>
    %60 = arith.select %31, %59, %58 : vector<64x128xi1>, vector<64x128xf32>
    %c63_i32_22 = arith.constant 63 : i32
    %61 = tpu.dynamic_rotate %57 by %c63_i32_22 dim 0 : vector<64x128xf32>, i32 -> vector<64x128xf32>
    %cst_23 = arith.constant 0.000000e+00 : f32
    %62 = vector.broadcast %cst_23 : f32 to vector<64x128xf32>
    %63 = arith.select %33, %62, %61 : vector<64x128xi1>, vector<64x128xf32>
    %64 = arith.truncf %60 : vector<64x128xf32> to vector<64x128xbf16>
    %65 = arith.truncf %57 : vector<64x128xf32> to vector<64x128xbf16>
    %66 = arith.truncf %63 : vector<64x128xf32> to vector<64x128xbf16>
    %67 = tpu.concatenate %42, %43, %44, %53, %54, %55, %64, %65, %66 in 1 : vector<64x128xbf16>, vector<64x128xbf16>, vector<64x128xbf16>, vector<64x128xbf16>, vector<64x128xbf16>, vector<64x128xbf16>, vector<64x128xbf16>, vector<64x128xbf16>, vector<64x128xbf16> -> vector<64x1152xbf16>
    %c0_24 = arith.constant 0 : index
    %c0_25 = arith.constant 0 : index
    %68 = vector.load %arg4[%c0_24, %c0_25] : memref<1152x128xbf16, #tpu.memory_space<vmem>>, vector<1152x128xbf16>
    %cst_26 = arith.constant dense<0.000000e+00> : vector<64x128xf32>
    %69 = tpu.matmul %67, %68, %cst_26 {dimension_numbers = #tpu.dot_dimension_numbers<[1], [0], [0], [1], [0, 0, 1, 1], [], []>} : vector<64x1152xbf16>, vector<1152x128xbf16>, vector<64x128xf32> -> vector<64x128xf32>
    %c0_27 = arith.constant 0 : index
    %c0_28 = arith.constant 0 : index
    %70 = vector.load %arg5[%c0_27, %c0_28] : memref<1x128xf32, #tpu.memory_space<vmem>>, vector<1x128xf32>
    %71 = vector.broadcast %70 : vector<1x128xf32> to vector<64x128xf32>
    %72 = arith.addf %69, %71 : vector<64x128xf32>
    %cst_29 = arith.constant 0.000000e+00 : f32
    %73 = vector.broadcast %cst_29 : f32 to vector<64x128xf32>
    %74 = arith.maximumf %72, %73 : vector<64x128xf32>
    %75 = arith.truncf %74 : vector<64x128xf32> to vector<64x128xbf16>
    %c0_30 = arith.constant 0 : index
    %c0_31 = arith.constant 0 : index
    %76 = vector.load %arg6[%c0_30, %c0_31] : memref<128x128xbf16, #tpu.memory_space<vmem>>, vector<128x128xbf16>
    %cst_32 = arith.constant dense<0.000000e+00> : vector<64x128xf32>
    %77 = tpu.matmul %75, %76, %cst_32 {dimension_numbers = #tpu.dot_dimension_numbers<[1], [0], [0], [1], [0, 0, 1, 1], [], []>} : vector<64x128xbf16>, vector<128x128xbf16>, vector<64x128xf32> -> vector<64x128xf32>
    %c0_33 = arith.constant 0 : index
    %c0_34 = arith.constant 0 : index
    %78 = vector.load %arg7[%c0_33, %c0_34] : memref<1x128xf32, #tpu.memory_space<vmem>>, vector<1x128xf32>
    %79 = vector.broadcast %78 : vector<1x128xf32> to vector<64x128xf32>
    %80 = arith.addf %77, %79 : vector<64x128xf32>
    %81 = arith.addf %80, %1 : vector<64x128xf32>
    %cst_35 = arith.constant 0.000000e+00 : f32
    %82 = vector.broadcast %cst_35 : f32 to vector<64x128xf32>
    %83 = arith.maximumf %81, %82 : vector<64x128xf32>
    %84 = vector.shape_cast %83 : vector<64x128xf32> to vector<1x8x8x128xf32>
    %c0_36 = arith.constant 0 : index
    %c0_37 = arith.constant 0 : index
    %c0_38 = arith.constant 0 : index
    %c0_39 = arith.constant 0 : index
    %85 = vector.load %arg8[%c0_36, %c0_37, %c0_38, %c0_39] : memref<1x8x8x128xf32, #tpu.memory_space<vmem>>, vector<1x8x8x128xf32>
    tpu.vector_store %arg8[%c0_36, %c0_37, %c0_38, %c0_39], %84 {strides = array<i32>} : memref<1x8x8x128xf32, #tpu.memory_space<vmem>>, vector<1x8x8x128xf32>,
    return
  }
  func.func @transform_0(%arg0: i32) -> (i32, i32, i32, i32) {
    %c0_i32 = arith.constant 0 : i32
    %c0_i32_0 = arith.constant 0 : i32
    %c0_i32_1 = arith.constant 0 : i32
    %c0_i32_2 = arith.constant 0 : i32
    return %arg0, %c0_i32, %c0_i32_0, %c0_i32_1 : i32, i32, i32, i32
  }
  func.func @transform_1(%arg0: i32) -> (i32, i32) {
    %c0_i32 = arith.constant 0 : i32
    %c0_i32_0 = arith.constant 0 : i32
    %c0_i32_1 = arith.constant 0 : i32
    return %c0_i32, %c0_i32_0 : i32, i32
  }
  func.func @transform_2(%arg0: i32) -> (i32, i32) {
    %c0_i32 = arith.constant 0 : i32
    %c0_i32_0 = arith.constant 0 : i32
    %c0_i32_1 = arith.constant 0 : i32
    return %c0_i32, %c0_i32_0 : i32, i32
  }
  func.func @transform_3(%arg0: i32) -> (i32, i32) {
    %c0_i32 = arith.constant 0 : i32
    %c0_i32_0 = arith.constant 0 : i32
    %c0_i32_1 = arith.constant 0 : i32
    return %c0_i32, %c0_i32_0 : i32, i32
  }
  func.func @transform_4(%arg0: i32) -> (i32, i32) {
    %c0_i32 = arith.constant 0 : i32
    %c0_i32_0 = arith.constant 0 : i32
    %c0_i32_1 = arith.constant 0 : i32
    return %c0_i32, %c0_i32_0 : i32, i32
  }
  func.func @transform_5(%arg0: i32) -> (i32, i32) {
    %c0_i32 = arith.constant 0 : i32
    %c0_i32_0 = arith.constant 0 : i32
    %c0_i32_1 = arith.constant 0 : i32
    return %c0_i32, %c0_i32_0 : i32, i32
  }
  func.func @transform_6(%arg0: i32) -> (i32, i32) {
    %c0_i32 = arith.constant 0 : i32
    %c0_i32_0 = arith.constant 0 : i32
    %c0_i32_1 = arith.constant 0 : i32
    return %c0_i32, %c0_i32_0 : i32, i32
  }
  func.func @transform_7(%arg0: i32) -> (i32, i32, i32, i32) {
    %c0_i32 = arith.constant 0 : i32
    %c0_i32_0 = arith.constant 0 : i32
    %c0_i32_1 = arith.constant 0 : i32
    %c0_i32_2 = arith.constant 0 : i32
    return %arg0, %c0_i32, %c0_i32_0, %c0_i32_1 : i32, i32, i32, i32
  }
}

</mosaic_0001>

<llo_original>
// kernel: tpu_custom_call.1
$region0: #{tpu_custom_call.1}
  #allocation0 [shape = 'u32[]', space=smem, size = 0x4, offset = 0x4, fixed_abs, tag = 'smem constant byte address 0x4 - core index']
  #allocation1 [shape = 'u32[144,128]{1,0:T(1,128)}', space=vmem, size = 0x12000, scoped, tag = 'internal scratch']
  %s0 = inlined_call_operand.hbm [shape: f32[2,8,8,128], index: 0, kind: input, shape index: {}]
  %s1 = inlined_call_operand.hbm [shape: bf16[128,128], index: 1, kind: input, shape index: {}]
  %s2 = inlined_call_operand.hbm [shape: f32[1,128], index: 2, kind: input, shape index: {}]
  %s3 = inlined_call_operand.hbm [shape: bf16[1152,128], index: 3, kind: input, shape index: {}]
  %s4 = inlined_call_operand.hbm [shape: f32[1,128], index: 4, kind: input, shape index: {}]
  %s5 = inlined_call_operand.hbm [shape: bf16[128,128], index: 5, kind: input, shape index: {}]
  %s6 = inlined_call_operand.hbm [shape: f32[1,128], index: 6, kind: input, shape index: {}]
  %s7 = inlined_call_operand.hbm [shape: f32[2,8,8,128], index: 7, kind: output, shape index: {}]
  %s8 = sld [smem:[#allocation0]]
  $region89: #{tpu_custom_call.1} parent=0
    _
  %s10 = ssub.s32 1, %s8
  %s11 = scalar_select 0, %s10, %s8
  $region1: #{tpu_custom_call.1} parent=0
    #allocation2 [shape = 'u8[65536]{0}', space=vmem, size = 0x10000, scoped, tag = 'input window, operand 0']
    #allocation3 [shape = 's32[2]{0}', space=sflag, size = 0x8, scoped, tag = 'scoped memory for tpu_custom_call.1']
    #allocation4 [shape = 's32[2]{0}', space=sflag, size = 0x8, scoped, tag = 'scoped memory for tpu_custom_call.1']
    #allocation5 [shape = 'u8[32768]{0}', space=vmem, size = 0x8000, scoped, tag = 'input window, operand 1, single buffered']
    #allocation6 [shape = 's32[1]{0}', space=sflag, size = 0x4, scoped, tag = 'scoped memory for tpu_custom_call.1']
    #allocation7 [shape = 'u8[512]{0}', space=vmem, size = 0x400, scoped, tag = 'input window, operand 2, single buffered']
    #allocation8 [shape = 'u8[294912]{0}', space=vmem, size = 0x48000, scoped, tag = 'input window, operand 3, single buffered']
    #allocation9 [shape = 's32[1]{0}', space=sflag, size = 0x4, scoped, tag = 'scoped memory for tpu_custom_call.1']
    #allocation10 [shape = 'u8[512]{0}', space=vmem, size = 0x400, scoped, tag = 'input window, operand 4, single buffered']
    #allocation11 [shape = 'u8[32768]{0}', space=vmem, size = 0x8000, scoped, tag = 'input window, operand 5, single buffered']
    #allocation12 [shape = 's32[1]{0}', space=sflag, size = 0x4, scoped, tag = 'scoped memory for tpu_custom_call.1']
    #allocation13 [shape = 'u8[512]{0}', space=vmem, size = 0x400, scoped, tag = 'input window, operand 6, single buffered']
    #allocation14 [shape = 'u8[65536]{0}', space=vmem, size = 0x10000, scoped, tag = 'output window, operand 0']
    %12 = vsyncpa [#allocation3], 0
    %s13 = scalar_lea.sflag [#allocation3], 1
    %14 = vsyncpa %s13, 0
    %15 = vsyncpa [#allocation6], 0
    %16 = vsyncpa [#allocation9], 0
    %17 = vsyncpa [#allocation12], 0
    %18 = vsyncpa [#allocation4], 0
    %s19 = scalar_lea.sflag [#allocation4], 1
    %20 = vsyncpa %s19, 0
    loop: start=0, step=1, limit=4
    $region2: #{tpu_custom_call.1} parent=1 // loop_pre_header
      _
    $region3: #{tpu_custom_call.1} parent=1 // loop_header
      %s22 = sphi 0, %s26
      %p23 = scmp.ge.s32.totalorder %s22, 4
      %s32 = sphi 0, %s34
      %s35 = sphi 0, %s32
      %s36 = sphi 0, %s35
      %s52 = sphi 0, %s36
      %s56 = sphi 0, %s56
      %s58 = sphi 0, %s56
      %s59 = sphi 0, %s58
      %s73 = sphi 0, %s59
      %s77 = sphi 0, %s77
      %s79 = sphi 0, %s77
      %s80 = sphi 0, %s79
      %s94 = sphi 0, %s80
      %s98 = sphi 0, %s98
      %s100 = sphi 0, %s98
      %s101 = sphi 0, %s100
      %s115 = sphi 0, %s101
      %s119 = sphi 0, %s119
      %s121 = sphi 0, %s119
      %s122 = sphi 0, %s121
      %s136 = sphi 0, %s122
      %s140 = sphi 0, %s140
      %s142 = sphi 0, %s140
      %s143 = sphi 0, %s142
      %s157 = sphi 0, %s143
      %s161 = sphi 0, %s161
      %s163 = sphi 0, %s161
      %s164 = sphi 0, %s163
      %s178 = sphi 0, %s164
      %s184 = sphi 0, %s186
      %s187 = sphi 0, %s184
      %s188 = sphi 0, %s187
      %s204 = sphi 0, %s188
    $region4: #{tpu_custom_call.1} parent=1 // loop_header_branch
      %25 = sbr.rel (%p23) target = $region8
    $region5: #{tpu_custom_call.1} parent=1 // loop_body
      %s27 = ssub.s32 %s22, 1
      %s28 = ssub.s32 %s22, 2
      %s29 = sadd.s32 %s22, 1
      %s30 = ssub.s32 %s22, %s29
      %p31 = scmp.eq.s32.totalorder %s30, 0
      %s33 = sadd.s32 %s32, 1
      %s34 = scalar_select %p31, %s32, %s33
      %p37 = pneg %p31
      %p38 = scmp.eq.s32.totalorder %s22, 1
      %p39 = por %p37, %p38
      %p40 = scmp.ne.s32.totalorder %s32, %s35
      %p41 = scmp.eq.s32.totalorder %s22, 0
      %p42 = por %p40, %p41
      %p43 = scmp.ne.s32.totalorder %s32, %s35
      %p44 = scmp.eq.s32.totalorder %s27, 1
      %p45 = por %p43, %p44
      %p46 = scmp.ne.s32.totalorder %s35, %s36
      %p47 = scmp.eq.s32.totalorder %s27, 0
      %p48 = por %p46, %p47
      %p49 = scmp.ne.s32.totalorder %s35, %s36
      %p50 = scmp.eq.s32.totalorder %s28, 1
      %p51 = por %p49, %p50
      %p53 = scmp.ne.s32.totalorder %s36, %s52
      %p54 = scmp.eq.s32.totalorder %s28, 0
      %p55 = por %p53, %p54
      %s57 = sadd.s32 %s56, 1
      %p60 = scmp.eq.s32.totalorder %s22, 1
      %p61 = scmp.ne.s32.totalorder %s56, %s58
      %p62 = scmp.eq.s32.totalorder %s22, 0
      %p63 = por %p61, %p62
      %p64 = scmp.ne.s32.totalorder %s56, %s58
      %p65 = scmp.eq.s32.totalorder %s27, 1
      %p66 = por %p64, %p65
      %p67 = scmp.ne.s32.totalorder %s58, %s59
      %p68 = scmp.eq.s32.totalorder %s27, 0
      %p69 = por %p67, %p68
      %p70 = scmp.ne.s32.totalorder %s58, %s59
      %p71 = scmp.eq.s32.totalorder %s28, 1
      %p72 = por %p70, %p71
      %p74 = scmp.ne.s32.totalorder %s59, %s73
      %p75 = scmp.eq.s32.totalorder %s28, 0
      %p76 = por %p74, %p75
      %s78 = sadd.s32 %s77, 1
      %p81 = scmp.eq.s32.totalorder %s22, 1
      %p82 = scmp.ne.s32.totalorder %s77, %s79
      %p83 = scmp.eq.s32.totalorder %s22, 0
      %p84 = por %p82, %p83
      %p85 = scmp.ne.s32.totalorder %s77, %s79
      %p86 = scmp.eq.s32.totalorder %s27, 1
      %p87 = por %p85, %p86
      %p88 = scmp.ne.s32.totalorder %s79, %s80
      %p89 = scmp.eq.s32.totalorder %s27, 0
      %p90 = por %p88, %p89
      %p91 = scmp.ne.s32.totalorder %s79, %s80
      %p92 = scmp.eq.s32.totalorder %s28, 1
      %p93 = por %p91, %p92
      %p95 = scmp.ne.s32.totalorder %s80, %s94
      %p96 = scmp.eq.s32.totalorder %s28, 0
      %p97 = por %p95, %p96
      %s99 = sadd.s32 %s98, 1
      %p102 = scmp.eq.s32.totalorder %s22, 1
      %p103 = scmp.ne.s32.totalorder %s98, %s100
      %p104 = scmp.eq.s32.totalorder %s22, 0
      %p105 = por %p103, %p104
      %p106 = scmp.ne.s32.totalorder %s98, %s100
      %p107 = scmp.eq.s32.totalorder %s27, 1
      %p108 = por %p106, %p107
      %p109 = scmp.ne.s32.totalorder %s100, %s101
      %p110 = scmp.eq.s32.totalorder %s27, 0
      %p111 = por %p109, %p110
      %p112 = scmp.ne.s32.totalorder %s100, %s101
      %p113 = scmp.eq.s32.totalorder %s28, 1
      %p114 = por %p112, %p113
      %p116 = scmp.ne.s32.totalorder %s101, %s115
      %p117 = scmp.eq.s32.totalorder %s28, 0
      %p118 = por %p116, %p117
      %s120 = sadd.s32 %s119, 1
      %p123 = scmp.eq.s32.totalorder %s22, 1
      %p124 = scmp.ne.s32.totalorder %s119, %s121
      %p125 = scmp.eq.s32.totalorder %s22, 0
      %p126 = por %p124, %p125
      %p127 = scmp.ne.s32.totalorder %s119, %s121
      %p128 = scmp.eq.s32.totalorder %s27, 1
      %p129 = por %p127, %p128
      %p130 = scmp.ne.s32.totalorder %s121, %s122
      %p131 = scmp.eq.s32.totalorder %s27, 0
      %p132 = por %p130, %p131
      %p133 = scmp.ne.s32.totalorder %s121, %s122
      %p134 = scmp.eq.s32.totalorder %s28, 1
      %p135 = por %p133, %p134
      %p137 = scmp.ne.s32.totalorder %s122, %s136
      %p138 = scmp.eq.s32.totalorder %s28, 0
      %p139 = por %p137, %p138
      %s141 = sadd.s32 %s140, 1
      %p144 = scmp.eq.s32.totalorder %s22, 1
      %p145 = scmp.ne.s32.totalorder %s140, %s142
      %p146 = scmp.eq.s32.totalorder %s22, 0
      %p147 = por %p145, %p146
      %p148 = scmp.ne.s32.totalorder %s140, %s142
      %p149 = scmp.eq.s32.totalorder %s27, 1
      %p150 = por %p148, %p149
      %p151 = scmp.ne.s32.totalorder %s142, %s143
      %p152 = scmp.eq.s32.totalorder %s27, 0
      %p153 = por %p151, %p152
      %p154 = scmp.ne.s32.totalorder %s142, %s143
      %p155 = scmp.eq.s32.totalorder %s28, 1
      %p156 = por %p154, %p155
      %p158 = scmp.ne.s32.totalorder %s143, %s157
      %p159 = scmp.eq.s32.totalorder %s28, 0
      %p160 = por %p158, %p159
      %s162 = sadd.s32 %s161, 1
      %p165 = scmp.eq.s32.totalorder %s22, 1
      %p166 = scmp.ne.s32.totalorder %s161, %s163
      %p167 = scmp.eq.s32.totalorder %s22, 0
      %p168 = por %p166, %p167
      %p169 = scmp.ne.s32.totalorder %s161, %s163
      %p170 = scmp.eq.s32.totalorder %s27, 1
      %p171 = por %p169, %p170
      %p172 = scmp.ne.s32.totalorder %s163, %s164
      %p173 = scmp.eq.s32.totalorder %s27, 0
      %p174 = por %p172, %p173
      %p175 = scmp.ne.s32.totalorder %s163, %s164
      %p176 = scmp.eq.s32.totalorder %s28, 1
      %p177 = por %p175, %p176
      %p179 = scmp.ne.s32.totalorder %s164, %s178
      %p180 = scmp.eq.s32.totalorder %s28, 0
      %p181 = por %p179, %p180
      %s182 = ssub.s32 %s22, %s29
      %p183 = scmp.eq.s32.totalorder %s182, 0
      %s185 = sadd.s32 %s184, 1
      %s186 = scalar_select %p183, %s184, %s185
      %p189 = pneg %p183
      %p190 = scmp.eq.s32.totalorder %s22, 1
      %p191 = por %p189, %p190
      %p192 = scmp.ne.s32.totalorder %s184, %s187
      %p193 = scmp.eq.s32.totalorder %s22, 0
      %p194 = por %p192, %p193
      %p195 = scmp.ne.s32.totalorder %s184, %s187
      %p196 = scmp.eq.s32.totalorder %s27, 1
      %p197 = por %p195, %p196
      %p198 = scmp.ne.s32.totalorder %s187, %s188
      %p199 = scmp.eq.s32.totalorder %s27, 0
      %p200 = por %p198, %p199
      %p201 = scmp.ne.s32.totalorder %s187, %s188
      %p202 = scmp.eq.s32.totalorder %s28, 1
      %p203 = por %p201, %p202
      %p205 = scmp.ne.s32.totalorder %s188, %s204
      %p206 = scmp.eq.s32.totalorder %s28, 0
      %p207 = por %p205, %p206
      %p208 = scmp.le.s32.totalorder 1, %s22
      %p209 = scmp.lt.s32.totalorder %s22, 3
      %p210 = pnand %p208, %p209
      %p211 = pneg %p210
      // Predicated region
      $region9: #{tpu_custom_call.1} parent=5 // pred_check
        _
      $region10: #{tpu_custom_call.1} parent=5 // pred_check_branch
        %213 = sbr.rel (%p210) target = $region12
      $region11: #{tpu_custom_call.1} parent=5 // pred_region
        %s214 = ssub.s32 %s22, 1
        // Predicated region
        $region13: #{tpu_custom_call.1} parent=11 // pred_check
          %p215 = pneg %p69
        $region14: #{tpu_custom_call.1} parent=11 // pred_check_branch
          %217 = sbr.rel (%p215) target = $region16
        $region15: #{tpu_custom_call.1} parent=11 // pred_region
          %s219 = ssub.s32 1024, 1024
          %220 = vsyncadd [#allocation6], %s219
          %s221 = sshll.u32 [#allocation5], 4
          %s222 = int_to_ptr.vmem [resolvable:$true] %s221
          %227 = dma.hbm_to_vmem [thread:$0]  %s1, 1024, %s222, [#allocation6], 64, 64, 4
        $region16: #{tpu_custom_call.1} parent=11 // pred_fallthru
          _
        // Predicated region
        $region17: #{tpu_custom_call.1} parent=11 // pred_check
          %p228 = pneg %p90
        $region18: #{tpu_custom_call.1} parent=11 // pred_check_branch
          %230 = sbr.rel (%p228) target = $region20
        $region19: #{tpu_custom_call.1} parent=11 // pred_region
          %s232 = ssub.s32 16, 16
          %233 = vsyncadd [#allocation6], %s232
          %s235 = sshll.u32 [#allocation7], 4
          %s236 = int_to_ptr.vmem [resolvable:$true] %s235
          %238 = dma.hbm_to_vmem [thread:$0]  %s2, 16, %s236, [#allocation6]
        $region20: #{tpu_custom_call.1} parent=11 // pred_fallthru
          _
        // Predicated region
        $region21: #{tpu_custom_call.1} parent=11 // pred_check
          %p239 = pneg %p111
        $region22: #{tpu_custom_call.1} parent=11 // pred_check_branch
          %241 = sbr.rel (%p239) target = $region24
        $region23: #{tpu_custom_call.1} parent=11 // pred_region
          %s243 = ssub.s32 9216, 9216
          %244 = vsyncadd [#allocation9], %s243
          %s245 = sshll.u32 [#allocation8], 4
          %s246 = int_to_ptr.vmem [resolvable:$true] %s245
          %251 = dma.hbm_to_vmem [thread:$0]  %s3, 9216, %s246, [#allocation9], 64, 64, 4
        $region24: #{tpu_custom_call.1} parent=11 // pred_fallthru
          _
        // Predicated region
        $region25: #{tpu_custom_call.1} parent=11 // pred_check
          %p252 = pneg %p132
        $region26: #{tpu_custom_call.1} parent=11 // pred_check_branch
          %254 = sbr.rel (%p252) target = $region28
        $region27: #{tpu_custom_call.1} parent=11 // pred_region
          %s256 = ssub.s32 16, 16
          %257 = vsyncadd [#allocation9], %s256
          %s259 = sshll.u32 [#allocation10], 4
          %s260 = int_to_ptr.vmem [resolvable:$true] %s259
          %262 = dma.hbm_to_vmem [thread:$0]  %s4, 16, %s260, [#allocation9]
        $region28: #{tpu_custom_call.1} parent=11 // pred_fallthru
          _
        // Predicated region
        $region29: #{tpu_custom_call.1} parent=11 // pred_check
          %p263 = pneg %p153
        $region30: #{tpu_custom_call.1} parent=11 // pred_check_branch
          %265 = sbr.rel (%p263) target = $region32
        $region31: #{tpu_custom_call.1} parent=11 // pred_region
          %s267 = ssub.s32 1024, 1024
          %268 = vsyncadd [#allocation12], %s267
          %s269 = sshll.u32 [#allocation11], 4
          %s270 = int_to_ptr.vmem [resolvable:$true] %s269
          %275 = dma.hbm_to_vmem [thread:$0]  %s5, 1024, %s270, [#allocation12], 64, 64, 4
        $region32: #{tpu_custom_call.1} parent=11 // pred_fallthru
          _
        // Predicated region
        $region33: #{tpu_custom_call.1} parent=11 // pred_check
          %p276 = pneg %p174
        $region34: #{tpu_custom_call.1} parent=11 // pred_check_branch
          %278 = sbr.rel (%p276) target = $region36
        $region35: #{tpu_custom_call.1} parent=11 // pred_region
          %s280 = ssub.s32 16, 16
          %281 = vsyncadd [#allocation12], %s280
          %s283 = sshll.u32 [#allocation13], 4
          %s284 = int_to_ptr.vmem [resolvable:$true] %s283
          %286 = dma.hbm_to_vmem [thread:$0]  %s6, 16, %s284, [#allocation12]
        $region36: #{tpu_custom_call.1} parent=11 // pred_fallthru
          _
      $region12: #{tpu_custom_call.1} parent=5 // pred_fallthru
        _
      %p287 = scmp.lt.s32.totalorder %s22, 2
      // Predicated region
      $region37: #{tpu_custom_call.1} parent=5 // pred_check
        %p288 = pneg %p287
      $region38: #{tpu_custom_call.1} parent=5 // pred_check_branch
        %290 = sbr.rel (%p288) target = $region40
      $region39: #{tpu_custom_call.1} parent=5 // pred_region
        // Predicated region
        $region41: #{tpu_custom_call.1} parent=39 // pred_check
          %p291 = pneg %p42
        $region42: #{tpu_custom_call.1} parent=39 // pred_check_branch
          %293 = sbr.rel (%p291) target = $region44
        $region43: #{tpu_custom_call.1} parent=39 // pred_region
          %s294 = sand.u32 %s32, 1
          %s295 = scalar_lea.sflag [#allocation3], %s294
          %s296 = sand.u32 %s32, 1
          %s297 = smul.addr %s296, 64
          %s298 = scalar_lea.vmem [#allocation2], %s297
          %s300 = ssub.s32 1024, 1024
          %301 = vsyncadd %s295, %s300
          %s302 = smul.addr %s22, 8
          %s303 = smul.addr %s302, 128
          %s304 = scalar_lea.hbm %s0, %s303
          %s305 = sshll.u32 %s298, 4
          %s306 = int_to_ptr.vmem [resolvable:$true] %s305
          %311 = dma.hbm_to_vmem [thread:$0]  %s304, 1024, %s306, %s295, 128, 128, 8
        $region44: #{tpu_custom_call.1} parent=39 // pred_fallthru
          _
      $region40: #{tpu_custom_call.1} parent=5 // pred_fallthru
        _
      %p312 = scmp.le.s32.totalorder 1, %s22
      %p313 = scmp.lt.s32.totalorder %s22, 3
      %p314 = pnand %p312, %p313
      %p315 = pneg %p314
      // Predicated region
      $region45: #{tpu_custom_call.1} parent=5 // pred_check
        _
      $region46: #{tpu_custom_call.1} parent=5 // pred_check_branch
        %317 = sbr.rel (%p314) target = $region48
      $region47: #{tpu_custom_call.1} parent=5 // pred_region
        %s318 = ssub.s32 %s22, 1
        %s319 = sand.u32 %s35, 1
        %s320 = scalar_lea.sflag [#allocation3], %s319
        %s321 = sand.u32 %s35, 1
        %s322 = smul.addr %s321, 64
        %s323 = scalar_lea.vmem [#allocation2], %s322
        // Predicated region
        $region49: #{tpu_custom_call.1} parent=47 // pred_check
          %p324 = pneg %p48
        $region50: #{tpu_custom_call.1} parent=47 // pred_check_branch
          %326 = sbr.rel (%p324) target = $region52
        $region51: #{tpu_custom_call.1} parent=47 // pred_region
          %327 = dma.done %s320, 1024
        $region52: #{tpu_custom_call.1} parent=47 // pred_fallthru
          _
        // Predicated region
        $region53: #{tpu_custom_call.1} parent=47 // pred_check
          %p328 = pneg %p69
        $region54: #{tpu_custom_call.1} parent=47 // pred_check_branch
          %330 = sbr.rel (%p328) target = $region56
        $region55: #{tpu_custom_call.1} parent=47 // pred_region
          %331 = dma.done [#allocation6], 1024
        $region56: #{tpu_custom_call.1} parent=47 // pred_fallthru
          _
        // Predicated region
        $region57: #{tpu_custom_call.1} parent=47 // pred_check
          %p332 = pneg %p90
        $region58: #{tpu_custom_call.1} parent=47 // pred_check_branch
          %334 = sbr.rel (%p332) target = $region60
        $region59: #{tpu_custom_call.1} parent=47 // pred_region
          %335 = dma.done [#allocation6], 16
        $region60: #{tpu_custom_call.1} parent=47 // pred_fallthru
          _
        // Predicated region
        $region61: #{tpu_custom_call.1} parent=47 // pred_check
          %p336 = pneg %p111
        $region62: #{tpu_custom_call.1} parent=47 // pred_check_branch
          %338 = sbr.rel (%p336) target = $region64
        $region63: #{tpu_custom_call.1} parent=47 // pred_region
          %339 = dma.done [#allocation9], 9216
        $region64: #{tpu_custom_call.1} parent=47 // pred_fallthru
          _
        // Predicated region
        $region65: #{tpu_custom_call.1} parent=47 // pred_check
          %p340 = pneg %p132
        $region66: #{tpu_custom_call.1} parent=47 // pred_check_branch
          %342 = sbr.rel (%p340) target = $region68
        $region67: #{tpu_custom_call.1} parent=47 // pred_region
          %343 = dma.done [#allocation9], 16
        $region68: #{tpu_custom_call.1} parent=47 // pred_fallthru
          _
        // Predicated region
        $region69: #{tpu_custom_call.1} parent=47 // pred_check
          %p344 = pneg %p153
        $region70: #{tpu_custom_call.1} parent=47 // pred_check_branch
          %346 = sbr.rel (%p344) target = $region72
        $region71: #{tpu_custom_call.1} parent=47 // pred_region
          %347 = dma.done [#allocation12], 1024
        $region72: #{tpu_custom_call.1} parent=47 // pred_fallthru
          _
        // Predicated region
        $region73: #{tpu_custom_call.1} parent=47 // pred_check
          %p348 = pneg %p174
        $region74: #{tpu_custom_call.1} parent=47 // pred_check_branch
          %350 = sbr.rel (%p348) target = $region76
        $region75: #{tpu_custom_call.1} parent=47 // pred_region
          %351 = dma.done [#allocation12], 16
        $region76: #{tpu_custom_call.1} parent=47 // pred_fallthru
          _
        %s352 = sand.u32 %s35, 1
        %s353 = scalar_lea.sflag [#allocation3], %s352
        %s354 = sand.u32 %s35, 1
        %s355 = smul.addr %s354, 64
        %s356 = scalar_lea.vmem [#allocation2], %s355
        %p357 = pneg %p48
        %p358 = pneg %p45
        %p359 = pneg %p69
        %p360 = pneg %p66
        %p361 = pneg %p90
        %p362 = pneg %p87
        %p363 = pneg %p111
        %p364 = pneg %p108
        %p365 = pneg %p132
        %p366 = pneg %p129
        %p367 = pneg %p153
        %p368 = pneg %p150
        %p369 = pneg %p174
        %p370 = pneg %p171
        %p371 = pneg %p200
        %p372 = pneg %p197
        %s373 = sand.u32 %s187, 1
        %s374 = scalar_lea.sflag [#allocation4], %s373
        %s375 = sand.u32 %s187, 1
        %s376 = smul.addr %s375, 64
        %s377 = scalar_lea.vmem [#allocation14], %s376
        %v379 = vld [vmem:[%s323] sm:$0xff]
        %v380 = vld [vmem:[%s323 + $0x8] sm:$0xff]
        %v381 = vld [vmem:[%s323 + $0x10] sm:$0xff]
        %v382 = vld [vmem:[%s323 + $0x18] sm:$0xff]
        %v383 = vld [vmem:[%s323 + $0x20] sm:$0xff]
        %v384 = vld [vmem:[%s323 + $0x28] sm:$0xff]
        %v385 = vld [vmem:[%s323 + $0x30] sm:$0xff]
        %v386 = vld [vmem:[%s323 + $0x38] sm:$0xff]
        %v387 = vpack.c.bf16 %v380, %v379
        %v388 = vpack.c.bf16 %v382, %v381
        %v389 = vpack.c.bf16 %v384, %v383
        %v390 = vpack.c.bf16 %v386, %v385
        %v391 = vld [vmem:[#allocation5] sm:$0xf]
        %v392 = vld [vmem:[#allocation5 + $0x4] sm:$0xf]
        %v393 = vld [vmem:[#allocation5 + $0x8] sm:$0xf]
        %v394 = vld [vmem:[#allocation5 + $0xc] sm:$0xf]
        %v395 = vld [vmem:[#allocation5 + $0x10] sm:$0xf]
        %v396 = vld [vmem:[#allocation5 + $0x14] sm:$0xf]
        %v397 = vld [vmem:[#allocation5 + $0x18] sm:$0xf]
        %v398 = vld [vmem:[#allocation5 + $0x1c] sm:$0xf]
        %v399 = vld [vmem:[#allocation5 + $0x20] sm:$0xf]
        %v400 = vld [vmem:[#allocation5 + $0x24] sm:$0xf]
        %v401 = vld [vmem:[#allocation5 + $0x28] sm:$0xf]
        %v402 = vld [vmem:[#allocation5 + $0x2c] sm:$0xf]
        %v403 = vld [vmem:[#allocation5 + $0x30] sm:$0xf]
        %v404 = vld [vmem:[#allocation5 + $0x34] sm:$0xf]
        %v405 = vld [vmem:[#allocation5 + $0x38] sm:$0xf]
        %v406 = vld [vmem:[#allocation5 + $0x3c] sm:$0xf]
        %v407 = vld [vmem:[#allocation7] sm:$0x1]
        %v409 = vlaneseq
        %v410 = vshrl.u32 %v409, 7
        %v411 = vsub.s32 0, %v410
        %v412 = vrot.slane %v407, %v411
        %v430 = vunpack.c.l.b16 %v391
        %v431 = vunpack.c.l.b16 %v392
        %v432 = vunpack.c.l.b16 %v393
        %v433 = vunpack.c.l.b16 %v394
        %v434 = vunpack.c.l.b16 %v395
        %v435 = vunpack.c.l.b16 %v396
        %v436 = vunpack.c.l.b16 %v397
        %v437 = vunpack.c.l.b16 %v398
        %v438 = vunpack.c.l.b16 %v399
        %v439 = vunpack.c.l.b16 %v400
        %v440 = vunpack.c.l.b16 %v401
        %v441 = vunpack.c.l.b16 %v402
        %v442 = vunpack.c.l.b16 %v403
        %v443 = vunpack.c.l.b16 %v404
        %v444 = vunpack.c.l.b16 %v405
        %v445 = vunpack.c.l.b16 %v406
        %v446 = vpack.c.b16 %v431, %v430
        %v447 = vpack.c.b16 %v433, %v432
        %v448 = vpack.c.b16 %v435, %v434
        %v449 = vpack.c.b16 %v437, %v436
        %v450 = vpack.c.b16 %v439, %v438
        %v451 = vpack.c.b16 %v441, %v440
        %v452 = vpack.c.b16 %v443, %v442
        %v453 = vpack.c.b16 %v445, %v444
        %462 = vmatprep.subr.bf16.mxu0 0
        %463 = vmatpush1.bf16.msra.mxu0 %v446
        %464 = vmatprep.subr.bf16.mxu0 0
        %465 = vmatpush1.bf16.msra.mxu0 %v447
        %466 = vmatprep.subr.bf16.mxu0 0
        %467 = vmatpush1.bf16.msra.mxu0 %v448
        %468 = vmatprep.subr.bf16.mxu0 0
        %469 = vmatpush1.bf16.msra.mxu0 %v449
        %470 = vmatprep.subr.bf16.mxu0 0
        %471 = vmatpush1.bf16.msra.mxu0 %v450
        %472 = vmatprep.subr.bf16.mxu0 0
        %473 = vmatpush1.bf16.msra.mxu0 %v451
        %474 = vmatprep.subr.bf16.mxu0 0
        %475 = vmatpush1.bf16.msra.mxu0 %v452
        %476 = vmatprep.subr.bf16.mxu0 0
        %477 = vmatpush1.bf16.msra.mxu0 %v453
        %478 = vmatprep.subr.bf16.mxu0 0
        %479 = vmatpush1.bf16.msra.mxu0 0
        %480 = vmatprep.subr.bf16.mxu0 0
        %481 = vmatpush1.bf16.msra.mxu0 0
        %482 = vmatprep.subr.bf16.mxu0 0
        %483 = vmatpush1.bf16.msra.mxu0 0
        %484 = vmatprep.subr.bf16.mxu0 0
        %485 = vmatpush1.bf16.msra.mxu0 0
        %486 = vmatprep.subr.bf16.mxu0 0
        %487 = vmatpush1.bf16.msra.mxu0 0
        %488 = vmatprep.subr.bf16.mxu0 0
        %489 = vmatpush1.bf16.msra.mxu0 0
        %490 = vmatprep.subr.bf16.mxu0 0
        %491 = vmatpush1.bf16.msra.mxu0 0
        %492 = vmatprep.subr.bf16.mxu0 0
        %493 = vmatpush1.bf16.msra.mxu0 0
        %494 = vmatprep.mubr.bf16.mxu0 0
        %495 = vmatmul.mubr.bf16.gmra.mrb[0].mxu0 %v387
        %v496 = vpop.f32.mrb[0].mxu0
        %v497 = vadd.f32 %v412, %v496
        %v498 = vpop.f32.mrb[0].mxu0
        %v499 = vpop.f32.mrb[0].mxu0
        %v500 = vadd.f32 %v412, %v499
        %v501 = vpop.f32.mrb[0].mxu0
        %502 = vmatprep.mubr.bf16.mxu0 0
        %503 = vmatmul.mubr.bf16.gmra.mrb[0].mxu0 %v388
        %v504 = vpop.f32.mrb[0].mxu0
        %v505 = vadd.f32 %v412, %v504
        %v506 = vpop.f32.mrb[0].mxu0
        %v507 = vpop.f32.mrb[0].mxu0
        %v508 = vadd.f32 %v412, %v507
        %v509 = vpop.f32.mrb[0].mxu0
        %510 = vmatprep.mubr.bf16.mxu0 0
        %511 = vmatmul.mubr.bf16.gmra.mrb[0].mxu0 %v389
        %v512 = vpop.f32.mrb[0].mxu0
        %v513 = vadd.f32 %v412, %v512
        %v514 = vpop.f32.mrb[0].mxu0
        %v515 = vpop.f32.mrb[0].mxu0
        %v516 = vadd.f32 %v412, %v515
        %v517 = vpop.f32.mrb[0].mxu0
        %518 = vmatprep.mubr.bf16.mxu0 0
        %519 = vmatmul.mubr.bf16.gmra.mrb[0].mxu0 %v390
        %v520 = vpop.f32.mrb[0].mxu0
        %v521 = vadd.f32 %v412, %v520
        %v522 = vpop.f32.mrb[0].mxu0
        %v523 = vpop.f32.mrb[0].mxu0
        %v524 = vadd.f32 %v412, %v523
        %v525 = vpop.f32.mrb[0].mxu0
        %526 = vdwg.mxu0
        %v527 = vmax.f32 %v497, 0.0
        %v528 = vmax.f32 %v500, 0.0
        %v529 = vmax.f32 %v505, 0.0
        %v530 = vmax.f32 %v508, 0.0
        %v531 = vmax.f32 %v513, 0.0
        %v532 = vmax.f32 %v516, 0.0
        %v533 = vmax.f32 %v521, 0.0
        %v534 = vmax.f32 %v524, 0.0
        %v535 = vlaneseq
        %v536 = vshrl.u32 %v535, 7
        %v537 = vadd.s32 %v536, 8
        %v538 = vadd.s32 %v536, 16
        %v539 = vadd.s32 %v536, 24
        %v540 = vadd.s32 %v536, 32
        %v541 = vadd.s32 %v536, 40
        %v542 = vadd.s32 %v536, 48
        %v543 = vadd.s32 %v536, 56
        %vm544 = vcmp.lt.s32.totalorder %v536, 0
        %v545 = vsub.s32 0, %v536
        %v546 = vsel %vm544, %v545, %v536
        %v547 = vshrl.u32 %v546, 3
        %v548 = vand.u32 %v546, 7
        %v549 = vsub.s32 0, %v548
        %v550 = vsel %vm544, %v549, %v548
        %vm551 = vcmp.lt.s32.totalorder %v537, 0
        %v552 = vsub.s32 0, %v537
        %v553 = vsel %vm551, %v552, %v537
        %v554 = vshrl.u32 %v553, 3
        %v555 = vand.u32 %v553, 7
        %v556 = vsub.s32 0, %v555
        %v557 = vsel %vm551, %v556, %v555
        %vm558 = vcmp.lt.s32.totalorder %v538, 0
        %v559 = vsub.s32 0, %v538
        %v560 = vsel %vm558, %v559, %v538
        %v561 = vshrl.u32 %v560, 3
        %v562 = vand.u32 %v560, 7
        %v563 = vsub.s32 0, %v562
        %v564 = vsel %vm558, %v563, %v562
        %vm565 = vcmp.lt.s32.totalorder %v539, 0
        %v566 = vsub.s32 0, %v539
        %v567 = vsel %vm565, %v566, %v539
        %v568 = vshrl.u32 %v567, 3
        %v569 = vand.u32 %v567, 7
        %v570 = vsub.s32 0, %v569
        %v571 = vsel %vm565, %v570, %v569
        %vm572 = vcmp.lt.s32.totalorder %v540, 0
        %v573 = vsub.s32 0, %v540
        %v574 = vsel %vm572, %v573, %v540
        %v575 = vshrl.u32 %v574, 3
        %v576 = vand.u32 %v574, 7
        %v577 = vsub.s32 0, %v576
        %v578 = vsel %vm572, %v577, %v576
        %vm579 = vcmp.lt.s32.totalorder %v541, 0
        %v580 = vsub.s32 0, %v541
        %v581 = vsel %vm579, %v580, %v541
        %v582 = vshrl.u32 %v581, 3
        %v583 = vand.u32 %v581, 7
        %v584 = vsub.s32 0, %v583
        %v585 = vsel %vm579, %v584, %v583
        %vm586 = vcmp.lt.s32.totalorder %v542, 0
        %v587 = vsub.s32 0, %v542
        %v588 = vsel %vm586, %v587, %v542
        %v589 = vshrl.u32 %v588, 3
        %v590 = vand.u32 %v588, 7
        %v591 = vsub.s32 0, %v590
        %v592 = vsel %vm586, %v591, %v590
        %vm593 = vcmp.lt.s32.totalorder %v543, 0
        %v594 = vsub.s32 0, %v543
        %v595 = vsel %vm593, %v594, %v543
        %v596 = vshrl.u32 %v595, 3
        %v597 = vand.u32 %v595, 7
        %v598 = vsub.s32 0, %v597
        %v599 = vsel %vm593, %v598, %v597
        %vm600 = vcmp.ne.s32.totalorder %v550, 0
        %vm601 = vcmp.ne.s32.totalorder %v557, 0
        %vm602 = vcmp.ne.s32.totalorder %v564, 0
        %vm603 = vcmp.ne.s32.totalorder %v571, 0
        %vm604 = vcmp.ne.s32.totalorder %v578, 0
        %vm605 = vcmp.ne.s32.totalorder %v585, 0
        %vm606 = vcmp.ne.s32.totalorder %v592, 0
        %vm607 = vcmp.ne.s32.totalorder %v599, 0
        %vm608 = vcmp.lt.s32.totalorder %v550, 0
        %vm609 = vcmp.lt.s32.totalorder %v557, 0
        %vm610 = vcmp.lt.s32.totalorder %v564, 0
        %vm611 = vcmp.lt.s32.totalorder %v571, 0
        %vm612 = vcmp.lt.s32.totalorder %v578, 0
        %vm613 = vcmp.lt.s32.totalorder %v585, 0
        %vm614 = vcmp.lt.s32.totalorder %v592, 0
        %vm615 = vcmp.lt.s32.totalorder %v599, 0
        %vm616 = vmand %vm608, %vm600
        %vm617 = vmand %vm609, %vm601
        %vm618 = vmand %vm610, %vm602
        %vm619 = vmand %vm611, %vm603
        %vm620 = vmand %vm612, %vm604
        %vm621 = vmand %vm613, %vm605
        %vm622 = vmand %vm614, %vm606
        %vm623 = vmand %vm615, %vm607
        %v624 = vadd.s32 %v550, 8
        %v625 = vadd.s32 %v557, 8
        %v626 = vadd.s32 %v564, 8
        %v627 = vadd.s32 %v571, 8
        %v628 = vadd.s32 %v578, 8
        %v629 = vadd.s32 %v585, 8
        %v630 = vadd.s32 %v592, 8
        %v631 = vadd.s32 %v599, 8
        %v632 = vsel %vm616, %v624, %v550
        %v633 = vsel %vm617, %v625, %v557
        %v634 = vsel %vm618, %v626, %v564
        %v635 = vsel %vm619, %v627, %v571
        %v636 = vsel %vm620, %v628, %v578
        %v637 = vsel %vm621, %v629, %v585
        %v638 = vsel %vm622, %v630, %v592
        %v639 = vsel %vm623, %v631, %v599
        %vm640 = vcmp.eq.s32.totalorder %v632, 0
        %vm641 = vcmp.eq.s32.totalorder %v633, 0
        %vm642 = vcmp.eq.s32.totalorder %v634, 0
        %vm643 = vcmp.eq.s32.totalorder %v635, 0
        %vm644 = vcmp.eq.s32.totalorder %v636, 0
        %vm645 = vcmp.eq.s32.totalorder %v637, 0
        %vm646 = vcmp.eq.s32.totalorder %v638, 0
        %vm647 = vcmp.eq.s32.totalorder %v639, 0
        %vm648 = vcmp.eq.s32.totalorder %v632, 7
        %vm649 = vcmp.eq.s32.totalorder %v633, 7
        %vm650 = vcmp.eq.s32.totalorder %v634, 7
        %vm651 = vcmp.eq.s32.totalorder %v635, 7
        %vm652 = vcmp.eq.s32.totalorder %v636, 7
        %vm653 = vcmp.eq.s32.totalorder %v637, 7
        %vm654 = vcmp.eq.s32.totalorder %v638, 7
        %vm655 = vcmp.eq.s32.totalorder %v639, 7
        %v656 = vrot.slane %v527, 7
        %v657 = vrot.slane %v528, 7
        %v658 = vrot.slane %v529, 7
        %v659 = vrot.slane %v530, 7
        %v660 = vrot.slane %v531, 7
        %v661 = vrot.slane %v532, 7
        %v662 = vrot.slane %v533, 7
        %vm663 = vcmp.lt.s32.totalorder %v536, 1
        %v664 = vsel %vm663, %v661, %v662
        %v665 = vsel %vm663, %v660, %v661
        %v666 = vsel %vm663, %v659, %v660
        %v667 = vsel %vm663, %v658, %v659
        %v668 = vsel %vm663, %v657, %v658
        %v669 = vsel %vm663, %v656, %v657
        %v670 = vsel %vm663, 0.0, %v656
        %v671 = vsel %vm663, %v662, 0.0
        %v672 = vsel %vm640, 0.0, %v671
        %v673 = vsel %vm641, 0.0, %v670
        %v674 = vsel %vm642, 0.0, %v669
        %v675 = vsel %vm643, 0.0, %v668
        %v676 = vsel %vm644, 0.0, %v667
        %v677 = vsel %vm645, 0.0, %v666
        %v678 = vsel %vm646, 0.0, %v665
        %v679 = vsel %vm647, 0.0, %v664
        %v680 = vrot.slane %v527, 1
        %v681 = vrot.slane %v528, 1
        %v682 = vrot.slane %v529, 1
        %v683 = vrot.slane %v530, 1
        %v684 = vrot.slane %v531, 1
        %v685 = vrot.slane %v532, 1
        %v686 = vrot.slane %v533, 1
        %vm687 = vcmp.lt.s32.totalorder %v536, 7
        %v688 = vsel %vm687, %v685, %v686
        %v689 = vsel %vm687, %v684, %v685
        %v690 = vsel %vm687, %v683, %v684
        %v691 = vsel %vm687, %v682, %v683
        %v692 = vsel %vm687, %v681, %v682
        %v693 = vsel %vm687, %v680, %v681
        %v694 = vsel %vm687, 0.0, %v680
        %v695 = vsel %vm687, %v686, 0.0
        %v696 = vsel %vm648, 0.0, %v694
        %v697 = vsel %vm649, 0.0, %v693
        %v698 = vsel %vm650, 0.0, %v692
        %v699 = vsel %vm651, 0.0, %v691
        %v700 = vsel %vm652, 0.0, %v690
        %v701 = vsel %vm653, 0.0, %v689
        %v702 = vsel %vm654, 0.0, %v688
        %v703 = vsel %vm655, 0.0, %v695
        %v704 = vpack.c.bf16 %v673, %v672
        %v705 = vpack.c.bf16 %v675, %v674
        %v706 = vpack.c.bf16 %v677, %v676
        %v707 = vpack.c.bf16 %v679, %v678
        %v708 = vpack.c.bf16 %v527, 0.0
        %v709 = vpack.c.bf16 %v529, %v528
        %v710 = vpack.c.bf16 %v531, %v530
        %v711 = vpack.c.bf16 %v533, %v532
        %v712 = vpack.c.bf16 %v697, %v696
        %v713 = vpack.c.bf16 %v699, %v698
        %v714 = vpack.c.bf16 %v701, %v700
        %v715 = vpack.c.bf16 %v703, %v702
        %v716 = vrot.slane %v534, 7
        %v717 = vsel %vm663, %v662, %v716
        %v718 = vsel %vm663, %v716, %v656
        %v719 = vsel %vm640, 0.0, %v718
        %v720 = vsel %vm641, 0.0, %v669
        %v721 = vsel %vm642, 0.0, %v668
        %v722 = vsel %vm643, 0.0, %v667
        %v723 = vsel %vm644, 0.0, %v666
        %v724 = vsel %vm645, 0.0, %v665
        %v725 = vsel %vm646, 0.0, %v664
        %v726 = vsel %vm647, 0.0, %v717
        %v727 = vrot.slane %v534, 1
        %v728 = vsel %vm687, %v686, %v727
        %v729 = vsel %vm687, %v727, %v680
        %v730 = vsel %vm648, 0.0, %v693
        %v731 = vsel %vm649, 0.0, %v692
        %v732 = vsel %vm650, 0.0, %v691
        %v733 = vsel %vm651, 0.0, %v690
        %v734 = vsel %vm652, 0.0, %v689
        %v735 = vsel %vm653, 0.0, %v688
        %v736 = vsel %vm654, 0.0, %v728
        %v737 = vsel %vm655, 0.0, %v729
        %v738 = vpack.c.bf16 %v720, %v719
        %v739 = vpack.c.bf16 %v722, %v721
        %v740 = vpack.c.bf16 %v724, %v723
        %v741 = vpack.c.bf16 %v726, %v725
        %v742 = vpack.c.bf16 %v528, %v527
        %v743 = vpack.c.bf16 %v530, %v529
        %v744 = vpack.c.bf16 %v532, %v531
        %v745 = vpack.c.bf16 %v534, %v533
        %v746 = vpack.c.bf16 %v731, %v730
        %v747 = vpack.c.bf16 %v733, %v732
        %v748 = vpack.c.bf16 %v735, %v734
        %v749 = vpack.c.bf16 %v737, %v736
        %v750 = vsel %vm663, %v716, 0.0
        %v751 = vsel %vm663, 0.0, %v657
        %v752 = vsel %vm640, 0.0, %v751
        %v753 = vsel %vm641, 0.0, %v668
        %v754 = vsel %vm642, 0.0, %v667
        %v755 = vsel %vm643, 0.0, %v666
        %v756 = vsel %vm644, 0.0, %v665
        %v757 = vsel %vm645, 0.0, %v664
        %v758 = vsel %vm646, 0.0, %v717
        %v759 = vsel %vm647, 0.0, %v750
        %v760 = vsel %vm687, %v727, 0.0
        %v761 = vsel %vm687, 0.0, %v681
        %v762 = vsel %vm648, 0.0, %v692
        %v763 = vsel %vm649, 0.0, %v691
        %v764 = vsel %vm650, 0.0, %v690
        %v765 = vsel %vm651, 0.0, %v689
        %v766 = vsel %vm652, 0.0, %v688
        %v767 = vsel %vm653, 0.0, %v728
        %v768 = vsel %vm654, 0.0, %v760
        %v769 = vsel %vm655, 0.0, %v761
        %v770 = vpack.c.bf16 %v753, %v752
        %v771 = vpack.c.bf16 %v755, %v754
        %v772 = vpack.c.bf16 %v757, %v756
        %v773 = vpack.c.bf16 %v759, %v758
        %v774 = vpack.c.bf16 0.0, %v534
        %v775 = vpack.c.bf16 %v763, %v762
        %v776 = vpack.c.bf16 %v765, %v764
        %v777 = vpack.c.bf16 %v767, %v766
        %v778 = vpack.c.bf16 %v769, %v768
        %v779 = vld [vmem:[#allocation8] sm:$0xf]
        %v780 = vld [vmem:[#allocation8 + $0x4] sm:$0xf]
        %v781 = vld [vmem:[#allocation8 + $0x8] sm:$0xf]
        %v782 = vld [vmem:[#allocation8 + $0xc] sm:$0xf]
        %v783 = vld [vmem:[#allocation8 + $0x10] sm:$0xf]
        %v784 = vld [vmem:[#allocation8 + $0x14] sm:$0xf]
        %v785 = vld [vmem:[#allocation8 + $0x18] sm:$0xf]
        %v786 = vld [vmem:[#allocation8 + $0x1c] sm:$0xf]
        %v787 = vld [vmem:[#allocation8 + $0x20] sm:$0xf]
        %v788 = vld [vmem:[#allocation8 + $0x24] sm:$0xf]
        %v789 = vld [vmem:[#allocation8 + $0x28] sm:$0xf]
        %v790 = vld [vmem:[#allocation8 + $0x2c] sm:$0xf]
        %v791 = vld [vmem:[#allocation8 + $0x30] sm:$0xf]
        %v792 = vld [vmem:[#allocation8 + $0x34] sm:$0xf]
        %v793 = vld [vmem:[#allocation8 + $0x38] sm:$0xf]
        %v794 = vld [vmem:[#allocation8 + $0x3c] sm:$0xf]
        %v795 = vld [vmem:[#allocation8 + $0x40] sm:$0xf]
        %v796 = vld [vmem:[#allocation8 + $0x44] sm:$0xf]
        %v797 = vld [vmem:[#allocation8 + $0x48] sm:$0xf]
        %v798 = vld [vmem:[#allocation8 + $0x4c] sm:$0xf]
        %v799 = vld [vmem:[#allocation8 + $0x50] sm:$0xf]
        %v800 = vld [vmem:[#allocation8 + $0x54] sm:$0xf]
        %v801 = vld [vmem:[#allocation8 + $0x58] sm:$0xf]
        %v802 = vld [vmem:[#allocation8 + $0x5c] sm:$0xf]
        %v803 = vld [vmem:[#allocation8 + $0x60] sm:$0xf]
        %v804 = vld [vmem:[#allocation8 + $0x64] sm:$0xf]
        %v805 = vld [vmem:[#allocation8 + $0x68] sm:$0xf]
        %v806 = vld [vmem:[#allocation8 + $0x6c] sm:$0xf]
        %v807 = vld [vmem:[#allocation8 + $0x70] sm:$0xf]
        %v808 = vld [vmem:[#allocation8 + $0x74] sm:$0xf]
        %v809 = vld [vmem:[#allocation8 + $0x78] sm:$0xf]
        %v810 = vld [vmem:[#allocation8 + $0x7c] sm:$0xf]
        %v811 = vld [vmem:[#allocation8 + $0x80] sm:$0xf]
        %v812 = vld [vmem:[#allocation8 + $0x84] sm:$0xf]
        %v813 = vld [vmem:[#allocation8 + $0x88] sm:$0xf]
        %v814 = vld [vmem:[#allocation8 + $0x8c] sm:$0xf]
        %v815 = vld [vmem:[#allocation8 + $0x90] sm:$0xf]
        %v816 = vld [vmem:[#allocation8 + $0x94] sm:$0xf]
        %v817 = vld [vmem:[#allocation8 + $0x98] sm:$0xf]
        %v818 = vld [vmem:[#allocation8 + $0x9c] sm:$0xf]
        %v819 = vld [vmem:[#allocation8 + $0xa0] sm:$0xf]
        %v820 = vld [vmem:[#allocation8 + $0xa4] sm:$0xf]
        %v821 = vld [vmem:[#allocation8 + $0xa8] sm:$0xf]
        %v822 = vld [vmem:[#allocation8 + $0xac] sm:$0xf]
        %v823 = vld [vmem:[#allocation8 + $0xb0] sm:$0xf]
        %v824 = vld [vmem:[#allocation8 + $0xb4] sm:$0xf]
        %v825 = vld [vmem:[#allocation8 + $0xb8] sm:$0xf]
        %v826 = vld [vmem:[#allocation8 + $0xbc] sm:$0xf]
        %v827 = vld [vmem:[#allocation8 + $0xc0] sm:$0xf]
        %v828 = vld [vmem:[#allocation8 + $0xc4] sm:$0xf]
        %v829 = vld [vmem:[#allocation8 + $0xc8] sm:$0xf]
        %v830 = vld [vmem:[#allocation8 + $0xcc] sm:$0xf]
        %v831 = vld [vmem:[#allocation8 + $0xd0] sm:$0xf]
        %v832 = vld [vmem:[#allocation8 + $0xd4] sm:$0xf]
        %v833 = vld [vmem:[#allocation8 + $0xd8] sm:$0xf]
        %v834 = vld [vmem:[#allocation8 + $0xdc] sm:$0xf]
        %v835 = vld [vmem:[#allocation8 + $0xe0] sm:$0xf]
        %v836 = vld [vmem:[#allocation8 + $0xe4] sm:$0xf]
        %v837 = vld [vmem:[#allocation8 + $0xe8] sm:$0xf]
        %v838 = vld [vmem:[#allocation8 + $0xec] sm:$0xf]
        %v839 = vld [vmem:[#allocation8 + $0xf0] sm:$0xf]
        %v840 = vld [vmem:[#allocation8 + $0xf4] sm:$0xf]
        %v841 = vld [vmem:[#allocation8 + $0xf8] sm:$0xf]
        %v842 = vld [vmem:[#allocation8 + $0xfc] sm:$0xf]
        %v843 = vld [vmem:[#allocation8 + $0x100] sm:$0xf]
        %v844 = vld [vmem:[#allocation8 + $0x104] sm:$0xf]
        %v845 = vld [vmem:[#allocation8 + $0x108] sm:$0xf]
        %v846 = vld [vmem:[#allocation8 + $0x10c] sm:$0xf]
        %v847 = vld [vmem:[#allocation8 + $0x110] sm:$0xf]
        %v848 = vld [vmem:[#allocation8 + $0x114] sm:$0xf]
        %v849 = vld [vmem:[#allocation8 + $0x118] sm:$0xf]
        %v850 = vld [vmem:[#allocation8 + $0x11c] sm:$0xf]
        %v851 = vld [vmem:[#allocation8 + $0x120] sm:$0xf]
        %v852 = vld [vmem:[#allocation8 + $0x124] sm:$0xf]
        %v853 = vld [vmem:[#allocation8 + $0x128] sm:$0xf]
        %v854 = vld [vmem:[#allocation8 + $0x12c] sm:$0xf]
        %v855 = vld [vmem:[#allocation8 + $0x130] sm:$0xf]
        %v856 = vld [vmem:[#allocation8 + $0x134] sm:$0xf]
        %v857 = vld [vmem:[#allocation8 + $0x138] sm:$0xf]
        %v858 = vld [vmem:[#allocation8 + $0x13c] sm:$0xf]
        %v859 = vld [vmem:[#allocation8 + $0x140] sm:$0xf]
        %v860 = vld [vmem:[#allocation8 + $0x144] sm:$0xf]
        %v861 = vld [vmem:[#allocation8 + $0x148] sm:$0xf]
        %v862 = vld [vmem:[#allocation8 + $0x14c] sm:$0xf]
        %v863 = vld [vmem:[#allocation8 + $0x150] sm:$0xf]
        %v864 = vld [vmem:[#allocation8 + $0x154] sm:$0xf]
        %v865 = vld [vmem:[#allocation8 + $0x158] sm:$0xf]
        %v866 = vld [vmem:[#allocation8 + $0x15c] sm:$0xf]
        %v867 = vld [vmem:[#allocation8 + $0x160] sm:$0xf]
        %v868 = vld [vmem:[#allocation8 + $0x164] sm:$0xf]
        %v869 = vld [vmem:[#allocation8 + $0x168] sm:$0xf]
        %v870 = vld [vmem:[#allocation8 + $0x16c] sm:$0xf]
        %v871 = vld [vmem:[#allocation8 + $0x170] sm:$0xf]
        %v872 = vld [vmem:[#allocation8 + $0x174] sm:$0xf]
        %v873 = vld [vmem:[#allocation8 + $0x178] sm:$0xf]
        %v874 = vld [vmem:[#allocation8 + $0x17c] sm:$0xf]
        %v875 = vld [vmem:[#allocation8 + $0x180] sm:$0xf]
        %v876 = vld [vmem:[#allocation8 + $0x184] sm:$0xf]
        %v877 = vld [vmem:[#allocation8 + $0x188] sm:$0xf]
        %v878 = vld [vmem:[#allocation8 + $0x18c] sm:$0xf]
        %v879 = vld [vmem:[#allocation8 + $0x190] sm:$0xf]
        %v880 = vld [vmem:[#allocation8 + $0x194] sm:$0xf]
        %v881 = vld [vmem:[#allocation8 + $0x198] sm:$0xf]
        %v882 = vld [vmem:[#allocation8 + $0x19c] sm:$0xf]
        %v883 = vld [vmem:[#allocation8 + $0x1a0] sm:$0xf]
        %v884 = vld [vmem:[#allocation8 + $0x1a4] sm:$0xf]
        %v885 = vld [vmem:[#allocation8 + $0x1a8] sm:$0xf]
        %v886 = vld [vmem:[#allocation8 + $0x1ac] sm:$0xf]
        %v887 = vld [vmem:[#allocation8 + $0x1b0] sm:$0xf]
        %v888 = vld [vmem:[#allocation8 + $0x1b4] sm:$0xf]
        %v889 = vld [vmem:[#allocation8 + $0x1b8] sm:$0xf]
        %v890 = vld [vmem:[#allocation8 + $0x1bc] sm:$0xf]
        %v891 = vld [vmem:[#allocation8 + $0x1c0] sm:$0xf]
        %v892 = vld [vmem:[#allocation8 + $0x1c4] sm:$0xf]
        %v893 = vld [vmem:[#allocation8 + $0x1c8] sm:$0xf]
        %v894 = vld [vmem:[#allocation8 + $0x1cc] sm:$0xf]
        %v895 = vld [vmem:[#allocation8 + $0x1d0] sm:$0xf]
        %v896 = vld [vmem:[#allocation8 + $0x1d4] sm:$0xf]
        %v897 = vld [vmem:[#allocation8 + $0x1d8] sm:$0xf]
        %v898 = vld [vmem:[#allocation8 + $0x1dc] sm:$0xf]
        %v899 = vld [vmem:[#allocation8 + $0x1e0] sm:$0xf]
        %v900 = vld [vmem:[#allocation8 + $0x1e4] sm:$0xf]
        %v901 = vld [vmem:[#allocation8 + $0x1e8] sm:$0xf]
        %v902 = vld [vmem:[#allocation8 + $0x1ec] sm:$0xf]
        %v903 = vld [vmem:[#allocation8 + $0x1f0] sm:$0xf]
        %v904 = vld [vmem:[#allocation8 + $0x1f4] sm:$0xf]
        %v905 = vld [vmem:[#allocation8 + $0x1f8] sm:$0xf]
        %v906 = vld [vmem:[#allocation8 + $0x1fc] sm:$0xf]
        %v907 = vld [vmem:[#allocation8 + $0x200] sm:$0xf]
        %v908 = vld [vmem:[#allocation8 + $0x204] sm:$0xf]
        %v909 = vld [vmem:[#allocation8 + $0x208] sm:$0xf]
        %v910 = vld [vmem:[#allocation8 + $0x20c] sm:$0xf]
        %v911 = vld [vmem:[#allocation8 + $0x210] sm:$0xf]
        %v912 = vld [vmem:[#allocation8 + $0x214] sm:$0xf]
        %v913 = vld [vmem:[#allocation8 + $0x218] sm:$0xf]
        %v914 = vld [vmem:[#allocation8 + $0x21c] sm:$0xf]
        %v915 = vld [vmem:[#allocation8 + $0x220] sm:$0xf]
        %v916 = vld [vmem:[#allocation8 + $0x224] sm:$0xf]
        %v917 = vld [vmem:[#allocation8 + $0x228] sm:$0xf]
        %v918 = vld [vmem:[#allocation8 + $0x22c] sm:$0xf]
        %v919 = vld [vmem:[#allocation8 + $0x230] sm:$0xf]
        %v920 = vld [vmem:[#allocation8 + $0x234] sm:$0xf]
        %v921 = vld [vmem:[#allocation8 + $0x238] sm:$0xf]
        %v922 = vld [vmem:[#allocation8 + $0x23c] sm:$0xf]
        %v923 = vld [vmem:[#allocation10] sm:$0x1]
        %v925 = vlaneseq
        %v926 = vshrl.u32 %v925, 7
        %v927 = vsub.s32 0, %v926
        %v928 = vrot.slane %v923, %v927
        %v1074 = vunpack.c.l.b16 %v779
        %v1075 = vunpack.c.l.b16 %v780
        %v1076 = vunpack.c.l.b16 %v781
        %v1077 = vunpack.c.l.b16 %v782
        %v1078 = vunpack.c.l.b16 %v783
        %v1079 = vunpack.c.l.b16 %v784
        %v1080 = vunpack.c.l.b16 %v785
        %v1081 = vunpack.c.l.b16 %v786
        %v1082 = vunpack.c.l.b16 %v787
        %v1083 = vunpack.c.l.b16 %v788
        %v1084 = vunpack.c.l.b16 %v789
        %v1085 = vunpack.c.l.b16 %v790
        %v1086 = vunpack.c.l.b16 %v791
        %v1087 = vunpack.c.l.b16 %v792
        %v1088 = vunpack.c.l.b16 %v793
        %v1089 = vunpack.c.l.b16 %v794
        %v1090 = vunpack.c.l.b16 %v795
        %v1091 = vunpack.c.l.b16 %v796
        %v1092 = vunpack.c.l.b16 %v797
        %v1093 = vunpack.c.l.b16 %v798
        %v1094 = vunpack.c.l.b16 %v799
        %v1095 = vunpack.c.l.b16 %v800
        %v1096 = vunpack.c.l.b16 %v801
        %v1097 = vunpack.c.l.b16 %v802
        %v1098 = vunpack.c.l.b16 %v803
        %v1099 = vunpack.c.l.b16 %v804
        %v1100 = vunpack.c.l.b16 %v805
        %v1101 = vunpack.c.l.b16 %v806
        %v1102 = vunpack.c.l.b16 %v807
        %v1103 = vunpack.c.l.b16 %v808
        %v1104 = vunpack.c.l.b16 %v809
        %v1105 = vunpack.c.l.b16 %v810
        %v1106 = vunpack.c.l.b16 %v811
        %v1107 = vunpack.c.l.b16 %v812
        %v1108 = vunpack.c.l.b16 %v813
        %v1109 = vunpack.c.l.b16 %v814
        %v1110 = vunpack.c.l.b16 %v815
        %v1111 = vunpack.c.l.b16 %v816
        %v1112 = vunpack.c.l.b16 %v817
        %v1113 = vunpack.c.l.b16 %v818
        %v1114 = vunpack.c.l.b16 %v819
        %v1115 = vunpack.c.l.b16 %v820
        %v1116 = vunpack.c.l.b16 %v821
        %v1117 = vunpack.c.l.b16 %v822
        %v1118 = vunpack.c.l.b16 %v823
        %v1119 = vunpack.c.l.b16 %v824
        %v1120 = vunpack.c.l.b16 %v825
        %v1121 = vunpack.c.l.b16 %v826
        %v1122 = vunpack.c.l.b16 %v827
        %v1123 = vunpack.c.l.b16 %v828
        %v1124 = vunpack.c.l.b16 %v829
        %v1125 = vunpack.c.l.b16 %v830
        %v1126 = vunpack.c.l.b16 %v831
        %v1127 = vunpack.c.l.b16 %v832
        %v1128 = vunpack.c.l.b16 %v833
        %v1129 = vunpack.c.l.b16 %v834
        %v1130 = vunpack.c.l.b16 %v835
        %v1131 = vunpack.c.l.b16 %v836
        %v1132 = vunpack.c.l.b16 %v837
        %v1133 = vunpack.c.l.b16 %v838
        %v1134 = vunpack.c.l.b16 %v839
        %v1135 = vunpack.c.l.b16 %v840
        %v1136 = vunpack.c.l.b16 %v841
        %v1137 = vunpack.c.l.b16 %v842
        %v1138 = vunpack.c.l.b16 %v843
        %v1139 = vunpack.c.l.b16 %v844
        %v1140 = vunpack.c.l.b16 %v845
        %v1141 = vunpack.c.l.b16 %v846
        %v1142 = vunpack.c.l.b16 %v847
        %v1143 = vunpack.c.l.b16 %v848
        %v1144 = vunpack.c.l.b16 %v849
        %v1145 = vunpack.c.l.b16 %v850
        %v1146 = vunpack.c.l.b16 %v851
        %v1147 = vunpack.c.l.b16 %v852
        %v1148 = vunpack.c.l.b16 %v853
        %v1149 = vunpack.c.l.b16 %v854
        %v1150 = vunpack.c.l.b16 %v855
        %v1151 = vunpack.c.l.b16 %v856
        %v1152 = vunpack.c.l.b16 %v857
        %v1153 = vunpack.c.l.b16 %v858
        %v1154 = vunpack.c.l.b16 %v859
        %v1155 = vunpack.c.l.b16 %v860
        %v1156 = vunpack.c.l.b16 %v861
        %v1157 = vunpack.c.l.b16 %v862
        %v1158 = vunpack.c.l.b16 %v863
        %v1159 = vunpack.c.l.b16 %v864
        %v1160 = vunpack.c.l.b16 %v865
        %v1161 = vunpack.c.l.b16 %v866
        %v1162 = vunpack.c.l.b16 %v867
        %v1163 = vunpack.c.l.b16 %v868
        %v1164 = vunpack.c.l.b16 %v869
        %v1165 = vunpack.c.l.b16 %v870
        %v1166 = vunpack.c.l.b16 %v871
        %v1167 = vunpack.c.l.b16 %v872
        %v1168 = vunpack.c.l.b16 %v873
        %v1169 = vunpack.c.l.b16 %v874
        %v1170 = vunpack.c.l.b16 %v875
        %v1171 = vunpack.c.l.b16 %v876
        %v1172 = vunpack.c.l.b16 %v877
        %v1173 = vunpack.c.l.b16 %v878
        %v1174 = vunpack.c.l.b16 %v879
        %v1175 = vunpack.c.l.b16 %v880
        %v1176 = vunpack.c.l.b16 %v881
        %v1177 = vunpack.c.l.b16 %v882
        %v1178 = vunpack.c.l.b16 %v883
        %v1179 = vunpack.c.l.b16 %v884
        %v1180 = vunpack.c.l.b16 %v885
        %v1181 = vunpack.c.l.b16 %v886
        %v1182 = vunpack.c.l.b16 %v887
        %v1183 = vunpack.c.l.b16 %v888
        %v1184 = vunpack.c.l.b16 %v889
        %v1185 = vunpack.c.l.b16 %v890
        %v1186 = vunpack.c.l.b16 %v891
        %v1187 = vunpack.c.l.b16 %v892
        %v1188 = vunpack.c.l.b16 %v893
        %v1189 = vunpack.c.l.b16 %v894
        %v1190 = vunpack.c.l.b16 %v895
        %v1191 = vunpack.c.l.b16 %v896
        %v1192 = vunpack.c.l.b16 %v897
        %v1193 = vunpack.c.l.b16 %v898
        %v1194 = vunpack.c.l.b16 %v899
        %v1195 = vunpack.c.l.b16 %v900
        %v1196 = vunpack.c.l.b16 %v901
        %v1197 = vunpack.c.l.b16 %v902
        %v1198 = vunpack.c.l.b16 %v903
        %v1199 = vunpack.c.l.b16 %v904
        %v1200 = vunpack.c.l.b16 %v905
        %v1201 = vunpack.c.l.b16 %v906
        %v1202 = vunpack.c.l.b16 %v907
        %v1203 = vunpack.c.l.b16 %v908
        %v1204 = vunpack.c.l.b16 %v909
        %v1205 = vunpack.c.l.b16 %v910
        %v1206 = vunpack.c.l.b16 %v911
        %v1207 = vunpack.c.l.b16 %v912
        %v1208 = vunpack.c.l.b16 %v913
        %v1209 = vunpack.c.l.b16 %v914
        %v1210 = vunpack.c.l.b16 %v915
        %v1211 = vunpack.c.l.b16 %v916
        %v1212 = vunpack.c.l.b16 %v917
        %v1213 = vunpack.c.l.b16 %v918
        %v1214 = vunpack.c.l.b16 %v919
        %v1215 = vunpack.c.l.b16 %v920
        %v1216 = vunpack.c.l.b16 %v921
        %v1217 = vunpack.c.l.b16 %v922
        %v1218 = vpack.c.b16 %v1075, %v1074
        %v1219 = vpack.c.b16 %v1077, %v1076
        %v1220 = vpack.c.b16 %v1079, %v1078
        %v1221 = vpack.c.b16 %v1081, %v1080
        %v1222 = vpack.c.b16 %v1083, %v1082
        %v1223 = vpack.c.b16 %v1085, %v1084
        %v1224 = vpack.c.b16 %v1087, %v1086
        %v1225 = vpack.c.b16 %v1089, %v1088
        %v1226 = vpack.c.b16 %v1091, %v1090
        %v1227 = vpack.c.b16 %v1093, %v1092
        %v1228 = vpack.c.b16 %v1095, %v1094
        %v1229 = vpack.c.b16 %v1097, %v1096
        %v1230 = vpack.c.b16 %v1099, %v1098
        %v1231 = vpack.c.b16 %v1101, %v1100
        %v1232 = vpack.c.b16 %v1103, %v1102
        %v1233 = vpack.c.b16 %v1105, %v1104
        %v1234 = vpack.c.b16 %v1107, %v1106
        %v1235 = vpack.c.b16 %v1109, %v1108
        %v1236 = vpack.c.b16 %v1111, %v1110
        %v1237 = vpack.c.b16 %v1113, %v1112
        %v1238 = vpack.c.b16 %v1115, %v1114
        %v1239 = vpack.c.b16 %v1117, %v1116
        %v1240 = vpack.c.b16 %v1119, %v1118
        %v1241 = vpack.c.b16 %v1121, %v1120
        %v1242 = vpack.c.b16 %v1123, %v1122
        %v1243 = vpack.c.b16 %v1125, %v1124
        %v1244 = vpack.c.b16 %v1127, %v1126
        %v1245 = vpack.c.b16 %v1129, %v1128
        %v1246 = vpack.c.b16 %v1131, %v1130
        %v1247 = vpack.c.b16 %v1133, %v1132
        %v1248 = vpack.c.b16 %v1135, %v1134
        %v1249 = vpack.c.b16 %v1137, %v1136
        %v1250 = vpack.c.b16 %v1139, %v1138
        %v1251 = vpack.c.b16 %v1141, %v1140
        %v1252 = vpack.c.b16 %v1143, %v1142
        %v1253 = vpack.c.b16 %v1145, %v1144
        %v1254 = vpack.c.b16 %v1147, %v1146
        %v1255 = vpack.c.b16 %v1149, %v1148
        %v1256 = vpack.c.b16 %v1151, %v1150
        %v1257 = vpack.c.b16 %v1153, %v1152
        %v1258 = vpack.c.b16 %v1155, %v1154
        %v1259 = vpack.c.b16 %v1157, %v1156
        %v1260 = vpack.c.b16 %v1159, %v1158
        %v1261 = vpack.c.b16 %v1161, %v1160
        %v1262 = vpack.c.b16 %v1163, %v1162
        %v1263 = vpack.c.b16 %v1165, %v1164
        %v1264 = vpack.c.b16 %v1167, %v1166
        %v1265 = vpack.c.b16 %v1169, %v1168
        %v1266 = vpack.c.b16 %v1171, %v1170
        %v1267 = vpack.c.b16 %v1173, %v1172
        %v1268 = vpack.c.b16 %v1175, %v1174
        %v1269 = vpack.c.b16 %v1177, %v1176
        %v1270 = vpack.c.b16 %v1179, %v1178
        %v1271 = vpack.c.b16 %v1181, %v1180
        %v1272 = vpack.c.b16 %v1183, %v1182
        %v1273 = vpack.c.b16 %v1185, %v1184
        %v1274 = vpack.c.b16 %v1187, %v1186
        %v1275 = vpack.c.b16 %v1189, %v1188
        %v1276 = vpack.c.b16 %v1191, %v1190
        %v1277 = vpack.c.b16 %v1193, %v1192
        %v1278 = vpack.c.b16 %v1195, %v1194
        %v1279 = vpack.c.b16 %v1197, %v1196
        %v1280 = vpack.c.b16 %v1199, %v1198
        %v1281 = vpack.c.b16 %v1201, %v1200
        %v1282 = vpack.c.b16 %v1203, %v1202
        %v1283 = vpack.c.b16 %v1205, %v1204
        %v1284 = vpack.c.b16 %v1207, %v1206
        %v1285 = vpack.c.b16 %v1209, %v1208
        %v1286 = vpack.c.b16 %v1211, %v1210
        %v1287 = vpack.c.b16 %v1213, %v1212
        %v1288 = vpack.c.b16 %v1215, %v1214
        %v1289 = vpack.c.b16 %v1217, %v1216
        %1362 = vmatprep.subr.bf16.mxu0 0
        %1363 = vmatpush1.bf16.msra.mxu0 %v1218
        %1364 = vmatprep.subr.bf16.mxu0 0
        %1365 = vmatpush1.bf16.msra.mxu0 %v1219
        %1366 = vmatprep.subr.bf16.mxu0 0
        %1367 = vmatpush1.bf16.msra.mxu0 %v1220
        %1368 = vmatprep.subr.bf16.mxu0 0
        %1369 = vmatpush1.bf16.msra.mxu0 %v1221
        %1370 = vmatprep.subr.bf16.mxu0 0
        %1371 = vmatpush1.bf16.msra.mxu0 %v1222
        %1372 = vmatprep.subr.bf16.mxu0 0
        %1373 = vmatpush1.bf16.msra.mxu0 %v1223
        %1374 = vmatprep.subr.bf16.mxu0 0
        %1375 = vmatpush1.bf16.msra.mxu0 %v1224
        %1376 = vmatprep.subr.bf16.mxu0 0
        %1377 = vmatpush1.bf16.msra.mxu0 %v1225
        %1378 = vmatprep.subr.bf16.mxu0 0
        %1379 = vmatpush1.bf16.msra.mxu0 %v1226
        %1380 = vmatprep.subr.bf16.mxu0 0
        %1381 = vmatpush1.bf16.msra.mxu0 %v1227
        %1382 = vmatprep.subr.bf16.mxu0 0
        %1383 = vmatpush1.bf16.msra.mxu0 %v1228
        %1384 = vmatprep.subr.bf16.mxu0 0
        %1385 = vmatpush1.bf16.msra.mxu0 %v1229
        %1386 = vmatprep.subr.bf16.mxu0 0
        %1387 = vmatpush1.bf16.msra.mxu0 %v1230
        %1388 = vmatprep.subr.bf16.mxu0 0
        %1389 = vmatpush1.bf16.msra.mxu0 %v1231
        %1390 = vmatprep.subr.bf16.mxu0 0
        %1391 = vmatpush1.bf16.msra.mxu0 %v1232
        %1392 = vmatprep.subr.bf16.mxu0 0
        %1393 = vmatpush1.bf16.msra.mxu0 %v1233
        %1394 = vmatprep.mubr.bf16.mxu0 %v708
        %1395 = vmatmul.mubr.bf16.gmra.mrb[0].mxu0 %v704
        %v1396 = vpop.f32.mrb[0].mxu0
        %v1397 = vadd.f32 %v928, %v1396
        %v1398 = vpop.f32.mrb[0].mxu0
        %v1399 = vpop.f32.mrb[0].mxu0
        %v1400 = vadd.f32 %v928, %v1399
        %v1401 = vpop.f32.mrb[0].mxu0
        %1402 = vmatprep.mubr.bf16.mxu0 %v709
        %1403 = vmatmul.mubr.bf16.gmra.mrb[0].mxu0 %v705
        %v1404 = vpop.f32.mrb[0].mxu0
        %v1405 = vadd.f32 %v928, %v1404
        %v1406 = vpop.f32.mrb[0].mxu0
        %v1407 = vpop.f32.mrb[0].mxu0
        %v1408 = vadd.f32 %v928, %v1407
        %v1409 = vpop.f32.mrb[0].mxu0
        %1410 = vmatprep.mubr.bf16.mxu0 %v710
        %1411 = vmatmul.mubr.bf16.gmra.mrb[0].mxu0 %v706
        %v1412 = vpop.f32.mrb[0].mxu0
        %v1413 = vadd.f32 %v928, %v1412
        %v1414 = vpop.f32.mrb[0].mxu0
        %v1415 = vpop.f32.mrb[0].mxu0
        %v1416 = vadd.f32 %v928, %v1415
        %v1417 = vpop.f32.mrb[0].mxu0
        %1418 = vmatprep.mubr.bf16.mxu0 %v711
        %1419 = vmatmul.mubr.bf16.gmra.mrb[0].mxu0 %v707
        %v1420 = vpop.f32.mrb[0].mxu0
        %v1421 = vadd.f32 %v928, %v1420
        %v1422 = vpop.f32.mrb[0].mxu0
        %v1423 = vpop.f32.mrb[0].mxu0
        %v1424 = vadd.f32 %v928, %v1423
        %v1425 = vpop.f32.mrb[0].mxu0
        %1426 = vdwg.mxu0
        %1427 = vmatprep.subr.bf16.mxu0 0
        %1428 = vmatpush1.bf16.msra.mxu0 %v1234
        %1429 = vmatprep.subr.bf16.mxu0 0
        %1430 = vmatpush1.bf16.msra.mxu0 %v1235
        %1431 = vmatprep.subr.bf16.mxu0 0
        %1432 = vmatpush1.bf16.msra.mxu0 %v1236
        %1433 = vmatprep.subr.bf16.mxu0 0
        %1434 = vmatpush1.bf16.msra.mxu0 %v1237
        %1435 = vmatprep.subr.bf16.mxu0 0
        %1436 = vmatpush1.bf16.msra.mxu0 %v1238
        %1437 = vmatprep.subr.bf16.mxu0 0
        %1438 = vmatpush1.bf16.msra.mxu0 %v1239
        %1439 = vmatprep.subr.bf16.mxu0 0
        %1440 = vmatpush1.bf16.msra.mxu0 %v1240
        %1441 = vmatprep.subr.bf16.mxu0 0
        %1442 = vmatpush1.bf16.msra.mxu0 %v1241
        %1443 = vmatprep.subr.bf16.mxu0 0
        %1444 = vmatpush1.bf16.msra.mxu0 %v1242
        %1445 = vmatprep.subr.bf16.mxu0 0
        %1446 = vmatpush1.bf16.msra.mxu0 %v1243
        %1447 = vmatprep.subr.bf16.mxu0 0
        %1448 = vmatpush1.bf16.msra.mxu0 %v1244
        %1449 = vmatprep.subr.bf16.mxu0 0
        %1450 = vmatpush1.bf16.msra.mxu0 %v1245
        %1451 = vmatprep.subr.bf16.mxu0 0
        %1452 = vmatpush1.bf16.msra.mxu0 %v1246
        %1453 = vmatprep.subr.bf16.mxu0 0
        %1454 = vmatpush1.bf16.msra.mxu0 %v1247
        %1455 = vmatprep.subr.bf16.mxu0 0
        %1456 = vmatpush1.bf16.msra.mxu0 %v1248
        %1457 = vmatprep.subr.bf16.mxu0 0
        %1458 = vmatpush1.bf16.msra.mxu0 %v1249
        %1459 = vmatprep.mubr.bf16.mxu0 %v738
        %1460 = vmatmul.mubr.bf16.gmra.mrb[0].mxu0 %v712
        %v1461 = vpop.f32.mrb[0].mxu0
        %v1462 = vadd.f32 %v1397, %v1461
        %v1463 = vpop.f32.mrb[0].mxu0
        %v1464 = vpop.f32.mrb[0].mxu0
        %v1465 = vadd.f32 %v1400, %v1464
        %v1466 = vpop.f32.mrb[0].mxu0
        %1467 = vmatprep.mubr.bf16.mxu0 %v739
        %1468 = vmatmul.mubr.bf16.gmra.mrb[0].mxu0 %v713
        %v1469 = vpop.f32.mrb[0].mxu0
        %v1470 = vadd.f32 %v1405, %v1469
        %v1471 = vpop.f32.mrb[0].mxu0
        %v1472 = vpop.f32.mrb[0].mxu0
        %v1473 = vadd.f32 %v1408, %v1472
        %v1474 = vpop.f32.mrb[0].mxu0
        %1475 = vmatprep.mubr.bf16.mxu0 %v740
        %1476 = vmatmul.mubr.bf16.gmra.mrb[0].mxu0 %v714
        %v1477 = vpop.f32.mrb[0].mxu0
        %v1478 = vadd.f32 %v1413, %v1477
        %v1479 = vpop.f32.mrb[0].mxu0
        %v1480 = vpop.f32.mrb[0].mxu0
        %v1481 = vadd.f32 %v1416, %v1480
        %v1482 = vpop.f32.mrb[0].mxu0
        %1483 = vmatprep.mubr.bf16.mxu0 %v741
        %1484 = vmatmul.mubr.bf16.gmra.mrb[0].mxu0 %v715
        %v1485 = vpop.f32.mrb[0].mxu0
        %v1486 = vadd.f32 %v1421, %v1485
        %v1487 = vpop.f32.mrb[0].mxu0
        %v1488 = vpop.f32.mrb[0].mxu0
        %v1489 = vadd.f32 %v1424, %v1488
        %v1490 = vpop.f32.mrb[0].mxu0
        %1491 = vdwg.mxu0
        %1492 = vmatprep.subr.bf16.mxu0 0
        %1493 = vmatpush1.bf16.msra.mxu0 %v1250
        %1494 = vmatprep.subr.bf16.mxu0 0
        %1495 = vmatpush1.bf16.msra.mxu0 %v1251
        %1496 = vmatprep.subr.bf16.mxu0 0
        %1497 = vmatpush1.bf16.msra.mxu0 %v1252
        %1498 = vmatprep.subr.bf16.mxu0 0
        %1499 = vmatpush1.bf16.msra.mxu0 %v1253
        %1500 = vmatprep.subr.bf16.mxu0 0
        %1501 = vmatpush1.bf16.msra.mxu0 %v1254
        %1502 = vmatprep.subr.bf16.mxu0 0
        %1503 = vmatpush1.bf16.msra.mxu0 %v1255
        %1504 = vmatprep.subr.bf16.mxu0 0
        %1505 = vmatpush1.bf16.msra.mxu0 %v1256
        %1506 = vmatprep.subr.bf16.mxu0 0
        %1507 = vmatpush1.bf16.msra.mxu0 %v1257
        %1508 = vmatprep.subr.bf16.mxu0 0
        %1509 = vmatpush1.bf16.msra.mxu0 %v1258
        %1510 = vmatprep.subr.bf16.mxu0 0
        %1511 = vmatpush1.bf16.msra.mxu0 %v1259
        %1512 = vmatprep.subr.bf16.mxu0 0
        %1513 = vmatpush1.bf16.msra.mxu0 %v1260
        %1514 = vmatprep.subr.bf16.mxu0 0
        %1515 = vmatpush1.bf16.msra.mxu0 %v1261
        %1516 = vmatprep.subr.bf16.mxu0 0
        %1517 = vmatpush1.bf16.msra.mxu0 %v1262
        %1518 = vmatprep.subr.bf16.mxu0 0
        %1519 = vmatpush1.bf16.msra.mxu0 %v1263
        %1520 = vmatprep.subr.bf16.mxu0 0
        %1521 = vmatpush1.bf16.msra.mxu0 %v1264
        %1522 = vmatprep.subr.bf16.mxu0 0
        %1523 = vmatpush1.bf16.msra.mxu0 %v1265
        %1524 = vmatprep.mubr.bf16.mxu0 %v746
        %1525 = vmatmul.mubr.bf16.gmra.mrb[0].mxu0 %v742
        %v1526 = vpop.f32.mrb[0].mxu0
        %v1527 = vadd.f32 %v1462, %v1526
        %v1528 = vpop.f32.mrb[0].mxu0
        %v1529 = vpop.f32.mrb[0].mxu0
        %v1530 = vadd.f32 %v1465, %v1529
        %v1531 = vpop.f32.mrb[0].mxu0
        %1532 = vmatprep.mubr.bf16.mxu0 %v747
        %1533 = vmatmul.mubr.bf16.gmra.mrb[0].mxu0 %v743
        %v1534 = vpop.f32.mrb[0].mxu0
        %v1535 = vadd.f32 %v1470, %v1534
        %v1536 = vpop.f32.mrb[0].mxu0
        %v1537 = vpop.f32.mrb[0].mxu0
        %v1538 = vadd.f32 %v1473, %v1537
        %v1539 = vpop.f32.mrb[0].mxu0
        %1540 = vmatprep.mubr.bf16.mxu0 %v748
        %1541 = vmatmul.mubr.bf16.gmra.mrb[0].mxu0 %v744
        %v1542 = vpop.f32.mrb[0].mxu0
        %v1543 = vadd.f32 %v1478, %v1542
        %v1544 = vpop.f32.mrb[0].mxu0
        %v1545 = vpop.f32.mrb[0].mxu0
        %v1546 = vadd.f32 %v1481, %v1545
        %v1547 = vpop.f32.mrb[0].mxu0
        %1548 = vmatprep.mubr.bf16.mxu0 %v749
        %1549 = vmatmul.mubr.bf16.gmra.mrb[0].mxu0 %v745
        %v1550 = vpop.f32.mrb[0].mxu0
        %v1551 = vadd.f32 %v1486, %v1550
        %v1552 = vpop.f32.mrb[0].mxu0
        %v1553 = vpop.f32.mrb[0].mxu0
        %v1554 = vadd.f32 %v1489, %v1553
        %v1555 = vpop.f32.mrb[0].mxu0
        %1556 = vdwg.mxu0
        %1557 = vmatprep.subr.bf16.mxu0 0
        %1558 = vmatpush1.bf16.msra.mxu0 %v1266
        %1559 = vmatprep.subr.bf16.mxu0 0
        %1560 = vmatpush1.bf16.msra.mxu0 %v1267
        %1561 = vmatprep.subr.bf16.mxu0 0
        %1562 = vmatpush1.bf16.msra.mxu0 %v1268
        %1563 = vmatprep.subr.bf16.mxu0 0
        %1564 = vmatpush1.bf16.msra.mxu0 %v1269
        %1565 = vmatprep.subr.bf16.mxu0 0
        %1566 = vmatpush1.bf16.msra.mxu0 %v1270
        %1567 = vmatprep.subr.bf16.mxu0 0
        %1568 = vmatpush1.bf16.msra.mxu0 %v1271
        %1569 = vmatprep.subr.bf16.mxu0 0
        %1570 = vmatpush1.bf16.msra.mxu0 %v1272
        %1571 = vmatprep.subr.bf16.mxu0 0
        %1572 = vmatpush1.bf16.msra.mxu0 %v1273
        %1573 = vmatprep.subr.bf16.mxu0 0
        %1574 = vmatpush1.bf16.msra.mxu0 %v1274
        %1575 = vmatprep.subr.bf16.mxu0 0
        %1576 = vmatpush1.bf16.msra.mxu0 %v1275
        %1577 = vmatprep.subr.bf16.mxu0 0
        %1578 = vmatpush1.bf16.msra.mxu0 %v1276
        %1579 = vmatprep.subr.bf16.mxu0 0
        %1580 = vmatpush1.bf16.msra.mxu0 %v1277
        %1581 = vmatprep.subr.bf16.mxu0 0
        %1582 = vmatpush1.bf16.msra.mxu0 %v1278
        %1583 = vmatprep.subr.bf16.mxu0 0
        %1584 = vmatpush1.bf16.msra.mxu0 %v1279
        %1585 = vmatprep.subr.bf16.mxu0 0
        %1586 = vmatpush1.bf16.msra.mxu0 %v1280
        %1587 = vmatprep.subr.bf16.mxu0 0
        %1588 = vmatpush1.bf16.msra.mxu0 %v1281
        %1589 = vmatprep.mubr.bf16.mxu0 %v709
        %1590 = vmatmul.mubr.bf16.gmra.mrb[0].mxu0 %v770
        %v1591 = vpop.f32.mrb[0].mxu0
        %v1592 = vadd.f32 %v1527, %v1591
        %v1593 = vpop.f32.mrb[0].mxu0
        %v1594 = vpop.f32.mrb[0].mxu0
        %v1595 = vadd.f32 %v1530, %v1594
        %v1596 = vpop.f32.mrb[0].mxu0
        %1597 = vmatprep.mubr.bf16.mxu0 %v710
        %1598 = vmatmul.mubr.bf16.gmra.mrb[0].mxu0 %v771
        %v1599 = vpop.f32.mrb[0].mxu0
        %v1600 = vadd.f32 %v1535, %v1599
        %v1601 = vpop.f32.mrb[0].mxu0
        %v1602 = vpop.f32.mrb[0].mxu0
        %v1603 = vadd.f32 %v1538, %v1602
        %v1604 = vpop.f32.mrb[0].mxu0
        %1605 = vmatprep.mubr.bf16.mxu0 %v711
        %1606 = vmatmul.mubr.bf16.gmra.mrb[0].mxu0 %v772
        %v1607 = vpop.f32.mrb[0].mxu0
        %v1608 = vadd.f32 %v1543, %v1607
        %v1609 = vpop.f32.mrb[0].mxu0
        %v1610 = vpop.f32.mrb[0].mxu0
        %v1611 = vadd.f32 %v1546, %v1610
        %v1612 = vpop.f32.mrb[0].mxu0
        %1613 = vmatprep.mubr.bf16.mxu0 %v774
        %1614 = vmatmul.mubr.bf16.gmra.mrb[0].mxu0 %v773
        %v1615 = vpop.f32.mrb[0].mxu0
        %v1616 = vadd.f32 %v1551, %v1615
        %v1617 = vpop.f32.mrb[0].mxu0
        %v1618 = vpop.f32.mrb[0].mxu0
        %v1619 = vadd.f32 %v1554, %v1618
        %v1620 = vpop.f32.mrb[0].mxu0
        %1621 = vdwg.mxu0
        %1622 = vmatprep.subr.bf16.mxu0 0
        %1623 = vmatpush1.bf16.msra.mxu0 %v1282
        %1624 = vmatprep.subr.bf16.mxu0 0
        %1625 = vmatpush1.bf16.msra.mxu0 %v1283
        %1626 = vmatprep.subr.bf16.mxu0 0
        %1627 = vmatpush1.bf16.msra.mxu0 %v1284
        %1628 = vmatprep.subr.bf16.mxu0 0
        %1629 = vmatpush1.bf16.msra.mxu0 %v1285
        %1630 = vmatprep.subr.bf16.mxu0 0
        %1631 = vmatpush1.bf16.msra.mxu0 %v1286
        %1632 = vmatprep.subr.bf16.mxu0 0
        %1633 = vmatpush1.bf16.msra.mxu0 %v1287
        %1634 = vmatprep.subr.bf16.mxu0 0
        %1635 = vmatpush1.bf16.msra.mxu0 %v1288
        %1636 = vmatprep.subr.bf16.mxu0 0
        %1637 = vmatpush1.bf16.msra.mxu0 %v1289
        %1638 = vmatprep.subr.bf16.mxu0 0
        %1639 = vmatpush1.bf16.msra.mxu0 0
        %1640 = vmatprep.subr.bf16.mxu0 0
        %1641 = vmatpush1.bf16.msra.mxu0 0
        %1642 = vmatprep.subr.bf16.mxu0 0
        %1643 = vmatpush1.bf16.msra.mxu0 0
        %1644 = vmatprep.subr.bf16.mxu0 0
        %1645 = vmatpush1.bf16.msra.mxu0 0
        %1646 = vmatprep.subr.bf16.mxu0 0
        %1647 = vmatpush1.bf16.msra.mxu0 0
        %1648 = vmatprep.subr.bf16.mxu0 0
        %1649 = vmatpush1.bf16.msra.mxu0 0
        %1650 = vmatprep.subr.bf16.mxu0 0
        %1651 = vmatpush1.bf16.msra.mxu0 0
        %1652 = vmatprep.subr.bf16.mxu0 0
        %1653 = vmatpush1.bf16.msra.mxu0 0
        %1654 = vmatprep.mubr.bf16.mxu0 0
        %1655 = vmatmul.mubr.bf16.gmra.mrb[0].mxu0 %v775
        %v1656 = vpop.f32.mrb[0].mxu0
        %v1657 = vadd.f32 %v1592, %v1656
        %v1658 = vpop.f32.mrb[0].mxu0
        %v1659 = vpop.f32.mrb[0].mxu0
        %v1660 = vadd.f32 %v1595, %v1659
        %v1661 = vpop.f32.mrb[0].mxu0
        %1662 = vmatprep.mubr.bf16.mxu0 0
        %1663 = vmatmul.mubr.bf16.gmra.mrb[0].mxu0 %v776
        %v1664 = vpop.f32.mrb[0].mxu0
        %v1665 = vadd.f32 %v1600, %v1664
        %v1666 = vpop.f32.mrb[0].mxu0
        %v1667 = vpop.f32.mrb[0].mxu0
        %v1668 = vadd.f32 %v1603, %v1667
        %v1669 = vpop.f32.mrb[0].mxu0
        %1670 = vmatprep.mubr.bf16.mxu0 0
        %1671 = vmatmul.mubr.bf16.gmra.mrb[0].mxu0 %v777
        %v1672 = vpop.f32.mrb[0].mxu0
        %v1673 = vadd.f32 %v1608, %v1672
        %v1674 = vpop.f32.mrb[0].mxu0
        %v1675 = vpop.f32.mrb[0].mxu0
        %v1676 = vadd.f32 %v1611, %v1675
        %v1677 = vpop.f32.mrb[0].mxu0
        %1678 = vmatprep.mubr.bf16.mxu0 0
        %1679 = vmatmul.mubr.bf16.gmra.mrb[0].mxu0 %v778
        %v1680 = vpop.f32.mrb[0].mxu0
        %v1681 = vadd.f32 %v1616, %v1680
        %v1682 = vpop.f32.mrb[0].mxu0
        %v1683 = vpop.f32.mrb[0].mxu0
        %v1684 = vadd.f32 %v1619, %v1683
        %v1685 = vpop.f32.mrb[0].mxu0
        %1686 = vdwg.mxu0
        %v1687 = vmax.f32 %v1657, 0.0
        %v1688 = vmax.f32 %v1660, 0.0
        %v1689 = vmax.f32 %v1665, 0.0
        %v1690 = vmax.f32 %v1668, 0.0
        %v1691 = vmax.f32 %v1673, 0.0
        %v1692 = vmax.f32 %v1676, 0.0
        %v1693 = vmax.f32 %v1681, 0.0
        %v1694 = vmax.f32 %v1684, 0.0
        %v1695 = vpack.c.bf16 %v1688, %v1687
        %v1696 = vpack.c.bf16 %v1690, %v1689
        %v1697 = vpack.c.bf16 %v1692, %v1691
        %v1698 = vpack.c.bf16 %v1694, %v1693
        %v1699 = vld [vmem:[#allocation11] sm:$0xf]
        %v1700 = vld [vmem:[#allocation11 + $0x4] sm:$0xf]
        %v1701 = vld [vmem:[#allocation11 + $0x8] sm:$0xf]
        %v1702 = vld [vmem:[#allocation11 + $0xc] sm:$0xf]
        %v1703 = vld [vmem:[#allocation11 + $0x10] sm:$0xf]
        %v1704 = vld [vmem:[#allocation11 + $0x14] sm:$0xf]
        %v1705 = vld [vmem:[#allocation11 + $0x18] sm:$0xf]
        %v1706 = vld [vmem:[#allocation11 + $0x1c] sm:$0xf]
        %v1707 = vld [vmem:[#allocation11 + $0x20] sm:$0xf]
        %v1708 = vld [vmem:[#allocation11 + $0x24] sm:$0xf]
        %v1709 = vld [vmem:[#allocation11 + $0x28] sm:$0xf]
        %v1710 = vld [vmem:[#allocation11 + $0x2c] sm:$0xf]
        %v1711 = vld [vmem:[#allocation11 + $0x30] sm:$0xf]
        %v1712 = vld [vmem:[#allocation11 + $0x34] sm:$0xf]
        %v1713 = vld [vmem:[#allocation11 + $0x38] sm:$0xf]
        %v1714 = vld [vmem:[#allocation11 + $0x3c] sm:$0xf]
        %v1715 = vld [vmem:[#allocation13] sm:$0x1]
        %v1717 = vlaneseq
        %v1718 = vshrl.u32 %v1717, 7
        %v1719 = vsub.s32 0, %v1718
        %v1720 = vrot.slane %v1715, %v1719
        %v1738 = vunpack.c.l.b16 %v1699
        %v1739 = vunpack.c.l.b16 %v1700
        %v1740 = vunpack.c.l.b16 %v1701
        %v1741 = vunpack.c.l.b16 %v1702
        %v1742 = vunpack.c.l.b16 %v1703
        %v1743 = vunpack.c.l.b16 %v1704
        %v1744 = vunpack.c.l.b16 %v1705
        %v1745 = vunpack.c.l.b16 %v1706
        %v1746 = vunpack.c.l.b16 %v1707
        %v1747 = vunpack.c.l.b16 %v1708
        %v1748 = vunpack.c.l.b16 %v1709
        %v1749 = vunpack.c.l.b16 %v1710
        %v1750 = vunpack.c.l.b16 %v1711
        %v1751 = vunpack.c.l.b16 %v1712
        %v1752 = vunpack.c.l.b16 %v1713
        %v1753 = vunpack.c.l.b16 %v1714
        %v1754 = vpack.c.b16 %v1739, %v1738
        %v1755 = vpack.c.b16 %v1741, %v1740
        %v1756 = vpack.c.b16 %v1743, %v1742
        %v1757 = vpack.c.b16 %v1745, %v1744
        %v1758 = vpack.c.b16 %v1747, %v1746
        %v1759 = vpack.c.b16 %v1749, %v1748
        %v1760 = vpack.c.b16 %v1751, %v1750
        %v1761 = vpack.c.b16 %v1753, %v1752
        %1770 = vmatprep.subr.bf16.mxu0 0
        %1771 = vmatpush1.bf16.msra.mxu0 %v1754
        %1772 = vmatprep.subr.bf16.mxu0 0
        %1773 = vmatpush1.bf16.msra.mxu0 %v1755
        %1774 = vmatprep.subr.bf16.mxu0 0
        %1775 = vmatpush1.bf16.msra.mxu0 %v1756
        %1776 = vmatprep.subr.bf16.mxu0 0
        %1777 = vmatpush1.bf16.msra.mxu0 %v1757
        %1778 = vmatprep.subr.bf16.mxu0 0
        %1779 = vmatpush1.bf16.msra.mxu0 %v1758
        %1780 = vmatprep.subr.bf16.mxu0 0
        %1781 = vmatpush1.bf16.msra.mxu0 %v1759
        %1782 = vmatprep.subr.bf16.mxu0 0
        %1783 = vmatpush1.bf16.msra.mxu0 %v1760
        %1784 = vmatprep.subr.bf16.mxu0 0
        %1785 = vmatpush1.bf16.msra.mxu0 %v1761
        %1786 = vmatprep.subr.bf16.mxu0 0
        %1787 = vmatpush1.bf16.msra.mxu0 0
        %1788 = vmatprep.subr.bf16.mxu0 0
        %1789 = vmatpush1.bf16.msra.mxu0 0
        %1790 = vmatprep.subr.bf16.mxu0 0
        %1791 = vmatpush1.bf16.msra.mxu0 0
        %1792 = vmatprep.subr.bf16.mxu0 0
        %1793 = vmatpush1.bf16.msra.mxu0 0
        %1794 = vmatprep.subr.bf16.mxu0 0
        %1795 = vmatpush1.bf16.msra.mxu0 0
        %1796 = vmatprep.subr.bf16.mxu0 0
        %1797 = vmatpush1.bf16.msra.mxu0 0
        %1798 = vmatprep.subr.bf16.mxu0 0
        %1799 = vmatpush1.bf16.msra.mxu0 0
        %1800 = vmatprep.subr.bf16.mxu0 0
        %1801 = vmatpush1.bf16.msra.mxu0 0
        %1802 = vmatprep.mubr.bf16.mxu0 0
        %1803 = vmatmul.mubr.bf16.gmra.mrb[0].mxu0 %v1695
        %v1804 = vpop.f32.mrb[0].mxu0
        %v1805 = vadd.f32 %v1720, %v1804
        %v1806 = vpop.f32.mrb[0].mxu0
        %v1807 = vpop.f32.mrb[0].mxu0
        %v1808 = vadd.f32 %v1720, %v1807
        %v1809 = vpop.f32.mrb[0].mxu0
        %1810 = vmatprep.mubr.bf16.mxu0 0
        %1811 = vmatmul.mubr.bf16.gmra.mrb[0].mxu0 %v1696
        %v1812 = vpop.f32.mrb[0].mxu0
        %v1813 = vadd.f32 %v1720, %v1812
        %v1814 = vpop.f32.mrb[0].mxu0
        %v1815 = vpop.f32.mrb[0].mxu0
        %v1816 = vadd.f32 %v1720, %v1815
        %v1817 = vpop.f32.mrb[0].mxu0
        %1818 = vmatprep.mubr.bf16.mxu0 0
        %1819 = vmatmul.mubr.bf16.gmra.mrb[0].mxu0 %v1697
        %v1820 = vpop.f32.mrb[0].mxu0
        %v1821 = vadd.f32 %v1720, %v1820
        %v1822 = vpop.f32.mrb[0].mxu0
        %v1823 = vpop.f32.mrb[0].mxu0
        %v1824 = vadd.f32 %v1720, %v1823
        %v1825 = vpop.f32.mrb[0].mxu0
        %1826 = vmatprep.mubr.bf16.mxu0 0
        %1827 = vmatmul.mubr.bf16.gmra.mrb[0].mxu0 %v1698
        %v1828 = vpop.f32.mrb[0].mxu0
        %v1829 = vadd.f32 %v1720, %v1828
        %v1830 = vpop.f32.mrb[0].mxu0
        %v1831 = vpop.f32.mrb[0].mxu0
        %v1832 = vadd.f32 %v1720, %v1831
        %v1833 = vpop.f32.mrb[0].mxu0
        %1834 = vdwg.mxu0
        %v1835 = vadd.f32 %v1805, %v379
        %v1836 = vadd.f32 %v1808, %v380
        %v1837 = vadd.f32 %v1813, %v381
        %v1838 = vadd.f32 %v1816, %v382
        %v1839 = vadd.f32 %v1821, %v383
        %v1840 = vadd.f32 %v1824, %v384
        %v1841 = vadd.f32 %v1829, %v385
        %v1842 = vadd.f32 %v1832, %v386
        %v1843 = vmax.f32 %v1835, 0.0
        %v1844 = vmax.f32 %v1836, 0.0
        %v1845 = vmax.f32 %v1837, 0.0
        %v1846 = vmax.f32 %v1838, 0.0
        %v1847 = vmax.f32 %v1839, 0.0
        %v1848 = vmax.f32 %v1840, 0.0
        %v1849 = vmax.f32 %v1841, 0.0
        %v1850 = vmax.f32 %v1842, 0.0
        %1851 = vst [vmem:[%s377] sm:$0xff] %v1843
        %1852 = vst [vmem:[%s377 + $0x8] sm:$0xff] %v1844
        %1853 = vst [vmem:[%s377 + $0x10] sm:$0xff] %v1845
        %1854 = vst [vmem:[%s377 + $0x18] sm:$0xff] %v1846
        %1855 = vst [vmem:[%s377 + $0x20] sm:$0xff] %v1847
        %1856 = vst [vmem:[%s377 + $0x28] sm:$0xff] %v1848
        %1857 = vst [vmem:[%s377 + $0x30] sm:$0xff] %v1849
        %1858 = vst [vmem:[%s377 + $0x38] sm:$0xff] %v1850
        %s1859 = sand.u32 %s187, 1
        %s1860 = scalar_lea.sflag [#allocation4], %s1859
        %s1861 = sand.u32 %s187, 1
        %s1862 = smul.addr %s1861, 64
        %s1863 = scalar_lea.vmem [#allocation14], %s1862
        // Predicated region
        $region77: #{tpu_custom_call.1} parent=47 // pred_check
          %p1864 = pneg %p197
        $region78: #{tpu_custom_call.1} parent=47 // pred_check_branch
          %1866 = sbr.rel (%p1864) target = $region80
        $region79: #{tpu_custom_call.1} parent=47 // pred_region
          %s1868 = ssub.s32 1024, 1024
          %1869 = vsyncadd %s1860, %s1868
          %s1870 = smul.addr %s27, 8
          %s1871 = smul.addr %s1870, 128
          %s1872 = scalar_lea.hbm %s7, %s1871
          %s1873 = sshll.u32 %s1863, 4
          %s1874 = int_to_ptr.vmem [resolvable:$true] %s1873
          %1879 = dma.vmem_to_hbm [thread:$0]  %s1874, 1024, %s1872, %s1860, 128, 128, 8
        $region80: #{tpu_custom_call.1} parent=47 // pred_fallthru
          _
      $region48: #{tpu_custom_call.1} parent=5 // pred_fallthru
        _
      %p1880 = scmp.le.s32.totalorder 2, %s22
      // Predicated region
      $region81: #{tpu_custom_call.1} parent=5 // pred_check
        %p1881 = pneg %p1880
      $region82: #{tpu_custom_call.1} parent=5 // pred_check_branch
        %1883 = sbr.rel (%p1881) target = $region84
      $region83: #{tpu_custom_call.1} parent=5 // pred_region
        %s1884 = ssub.s32 %s22, 2
        // Predicated region
        $region85: #{tpu_custom_call.1} parent=83 // pred_check
          %p1885 = pneg %p203
        $region86: #{tpu_custom_call.1} parent=83 // pred_check_branch
          %1887 = sbr.rel (%p1885) target = $region88
        $region87: #{tpu_custom_call.1} parent=83 // pred_region
          %s1888 = sand.u32 %s188, 1
          %s1889 = scalar_lea.sflag [#allocation4], %s1888
          %s1890 = sand.u32 %s188, 1
          %s1891 = smul.addr %s1890, 64
          %s1892 = scalar_lea.vmem [#allocation14], %s1891
          %1893 = dma.done %s1889, 1024
        $region88: #{tpu_custom_call.1} parent=83 // pred_fallthru
          _
      $region84: #{tpu_custom_call.1} parent=5 // pred_fallthru
        _
    $region6: #{tpu_custom_call.1} parent=1 // loop_footer
      %s26 = sadd.s32 1, %s22
    $region7: #{tpu_custom_call.1} parent=1 // loop_footer_branch
      %21 = sbr.rel target = $region3
    $region8: #{tpu_custom_call.1} parent=1 // loop_exit
      _
    %1894 = vsyncpa [#allocation3], 1
    %s1895 = scalar_lea.sflag [#allocation3], 1
    %1896 = vsyncpa %s1895, 1
    %1897 = vsyncpa [#allocation6], 1
    %1898 = vsyncpa [#allocation9], 1
    %1899 = vsyncpa [#allocation12], 1
    %1900 = vsyncpa [#allocation4], 1
    %s1901 = scalar_lea.sflag [#allocation4], 1
    %1902 = vsyncpa %s1901, 1

</llo_original>
